<compile_context>
chip_gen: v7x
topology: tpu7x:2x2x1
jax: 0.10.0
libtpu: 0.0.40
codegen_flags: <defaults>
</compile_context>

<pallas_src>
import functools
import math

import numpy as np
import jax
import jax.numpy as jnp
from jax.experimental import pallas as pl
from jax.experimental.pallas import tpu as pltpu


# ----------------------------------------------------------------------------------
# small math helpers usable inside Pallas kernels (exp/log/sqrt/select/arith + pl.reciprocal)
# ----------------------------------------------------------------------------------
def _atan(x):
    # arctan via reciprocal range-reduction + two half-angle reductions + odd Taylor series.
    # Only ops guaranteed to lower on Mosaic TPU; divides go through the EUP (approx recip).
    sgn = jnp.where(x < 0.0, -1.0, 1.0)
    t = jnp.abs(x)
    big = t > 1.0
    t = jnp.where(big, pl.reciprocal(jnp.maximum(t, 1e-30), approx=True), t)
    y = t * pl.reciprocal(1.0 + jnp.sqrt(1.0 + t * t), approx=True)
    y = y * pl.reciprocal(1.0 + jnp.sqrt(1.0 + y * y), approx=True)
    y2 = y * y
    s = y * (1.0 + y2 * (-1.0 / 3.0 + y2 * (1.0 / 5.0 + y2 * (-1.0 / 7.0 + y2 * (1.0 / 9.0)))))
    r = 4.0 * s
    r = jnp.where(big, (math.pi / 2.0) - r, r)
    return sgn * r


def _bce_with_logits(x, y, pos_weight):
    # pos-weighted BCEWithLogits with the shared softplus term CSE'd:
    #   softplus(x)  = relu(x)  + log1p(exp(-|x|))
    #   softplus(-x) = relu(-x) + log1p(exp(-|x|))
    L = jnp.log(1.0 + jnp.exp(-jnp.abs(x)))
    return pos_weight * y * (jnp.maximum(-x, 0.0) + L) + (1.0 - y) * (jnp.maximum(x, 0.0) + L)


def _ceil_to(v, m):
    return int(-(-int(v) // m)) * m


def _bucket_pow2_1024(n):
    # per-level target bucket: power of two, at least 1024 -> (8,128)-aligned tiles, few variants
    return max(1024, 1 << max(int(n) - 1, 0).bit_length())


# ----------------------------------------------------------------------------------
# Kernel A: per-level objectness BCE-with-logits (gridded, 1 MiB blocks, (8,128) partials)
# ----------------------------------------------------------------------------------
def _obj_bce_kernel(x_ref, y_ref, o_ref, *, pos_weight, weight, numel, tile_r):
    pid = pl.program_id(0)
    x = x_ref[...].astype(jnp.float32)                       # (tile_r, 128)
    y = y_ref[...].astype(jnp.float32)
    row = jax.lax.broadcasted_iota(jnp.int32, (tile_r, 128), 0)
    lane = jax.lax.broadcasted_iota(jnp.int32, (tile_r, 128), 1)
    idx = (pid * tile_r + row) * 128 + lane                   # global flat element index
    loss = _bce_with_logits(x, y, pos_weight) * weight        # weight = balance[i] / numel
    loss = jnp.where(idx < numel, loss, 0.0)                  # padding contributes nothing
    o_ref[...] = jnp.sum(loss.reshape(tile_r // 8, 8, 128), axis=0)   # (8,128) partial


def obj_bce_level(x_flat, y_flat, balance_i, obj_pw):
    """balance_i * mean(BCEWithLogits(x_flat, y_flat, pos_weight=obj_pw)) for one level."""
    numel = int(x_flat.shape[0])
    rows_needed = -(-numel // 128)
    tile_r = min(2048, _ceil_to(rows_needed, 8))              # <=1 MiB / block (v5e-safe)
    grid = -(-rows_needed // tile_r)
    rows = grid * tile_r
    pad = rows * 128 - numel
    x2 = jnp.pad(x_flat, (0, pad)).reshape(rows, 128)
    y2 = jnp.pad(y_flat, (0, pad)).reshape(rows, 128)

    partials = pl.pallas_call(
        functools.partial(_obj_bce_kernel, pos_weight=float(obj_pw),
                          weight=float(balance_i) / numel, numel=numel, tile_r=tile_r),
        out_shape=jax.ShapeDtypeStruct((grid * 8, 128), jnp.float32),
        grid=(grid,),
        in_specs=[pl.BlockSpec((tile_r, 128), lambda i: (i, 0)),
                  pl.BlockSpec((tile_r, 128), lambda i: (i, 0))],
        out_specs=pl.BlockSpec((8, 128), lambda i: (i, 0)),
        compiler_params=pltpu.CompilerParams(dimension_semantics=("parallel",)),
    )(x2, y2)
    return jnp.sum(partials)


# ----------------------------------------------------------------------------------
# Kernel B: fused (all levels), gridded matched-target kernel -- sigmoid decode, CIoU
#           (box loss + iou for tobj) and class BCE-with-logits.  Blocks of 1024 targets
#           laid out as (8,128) tiles; per-row weight carries the 1/n_i level weighting.
# ----------------------------------------------------------------------------------
def _target_kernel(p_ref, tb_ref, an_ref, tc_ref, w_ref,
                   iou_ref, lbox_ref, lcls_ref, *, nc, cls_pw, cp, cn):
    eps = 1e-7
    w = w_ref[...]                                            # (8,128): 1/n_i valid, 0 pad

    # YOLOv5 head decode: one batched sigmoid over the 4 box channels
    s = pl.reciprocal(1.0 + jnp.exp(-p_ref[0:4].astype(jnp.float32)), approx=True)  # (4,8,128)
    px = s[0] * 2.0 - 0.5
    py = s[1] * 2.0 - 0.5
    sw2 = s[2] * 2.0
    sh2 = s[3] * 2.0
    pw = sw2 * sw2 * an_ref[0]
    ph = sh2 * sh2 * an_ref[1]
    tx = tb_ref[0]
    ty = tb_ref[1]
    tw = tb_ref[2]                                            # padded rows carry wh = 1
    th = tb_ref[3]

    # CIoU on cxcywh boxes (IOUloss(loss_type='ciou', xyxy=False, reduction='mean'))
    b1x1, b1x2 = px - pw * 0.5, px + pw * 0.5
    b1y1, b1y2 = py - ph * 0.5, py + ph * 0.5
    b2x1, b2x2 = tx - tw * 0.5, tx + tw * 0.5
    b2y1, b2y2 = ty - th * 0.5, ty + th * 0.5
    iw = jnp.maximum(jnp.minimum(b1x2, b2x2) - jnp.maximum(b1x1, b2x1), 0.0)
    ih = jnp.maximum(jnp.minimum(b1y2, b2y2) - jnp.maximum(b1y1, b2y1), 0.0)
    inter = iw * ih
    union = pw * ph + tw * th - inter + eps
    iou = inter * pl.reciprocal(union, approx=True)
    cw = jnp.maximum(b1x2, b2x2) - jnp.minimum(b1x1, b2x1)
    ch = jnp.maximum(b1y2, b2y2) - jnp.minimum(b1y1, b2y1)
    c2 = cw * cw + ch * ch + eps
    rho2 = ((b2x1 + b2x2 - b1x1 - b1x2) ** 2 + (b2y1 + b2y2 - b1y1 - b1y2) ** 2) * 0.25
    at_t = _atan(tw * pl.reciprocal(th + eps, approx=True))
    at_p = _atan(pw * pl.reciprocal(ph + eps, approx=True))
    v = (4.0 / (math.pi ** 2)) * (at_t - at_p) ** 2
    alpha = v * pl.reciprocal(v - iou + (1.0 + eps), approx=True)
    ciou = iou - (rho2 * pl.reciprocal(c2, approx=True) + v * alpha)

    iou_ref[...] = ciou
    lbox_ref[...] = (1.0 - ciou) * w                          # sum == Σ_levels mean(1-ciou)

    # classification BCE-with-logits (pos_weight = cls_pw); smooth labels generated in-kernel
    tcl = tc_ref[...]                                         # (8,128) int32 class ids
    acc = jnp.zeros_like(w)
    for c in range(nc):
        pc = p_ref[5 + c].astype(jnp.float32)                 # (8,128)
        t = jnp.where(tcl == c, cp, cn)
        acc = acc + _bce_with_logits(pc, t, cls_pw)
    lcls_ref[...] = acc * w                                   # Σ /nc done host-side


def target_losses_fused(p_in, tb_in, an_in, tc_in, w_in, rows, no, nc, cls_pw, cp, cn):
    grid = rows // 8
    return pl.pallas_call(
        functools.partial(_target_kernel, nc=int(nc), cls_pw=float(cls_pw),
                          cp=float(cp), cn=float(cn)),
        out_shape=(jax.ShapeDtypeStruct((rows, 128), jnp.float32),   # ciou per target
                   jax.ShapeDtypeStruct((rows, 128), jnp.float32),   # weighted box-loss terms
                   jax.ShapeDtypeStruct((rows, 128), jnp.float32)),  # weighted cls-loss terms
        grid=(grid,),
        in_specs=[pl.BlockSpec((no, 8, 128), lambda i: (0, i, 0)),
                  pl.BlockSpec((4, 8, 128), lambda i: (0, i, 0)),
                  pl.BlockSpec((2, 8, 128), lambda i: (0, i, 0)),
                  pl.BlockSpec((8, 128), lambda i: (i, 0)),
                  pl.BlockSpec((8, 128), lambda i: (i, 0))],
        out_specs=(pl.BlockSpec((8, 128), lambda i: (i, 0)),
                   pl.BlockSpec((8, 128), lambda i: (i, 0)),
                   pl.BlockSpec((8, 128), lambda i: (i, 0))),
        compiler_params=pltpu.CompilerParams(dimension_semantics=("parallel",)),
    )(p_in, tb_in, an_in, tc_in, w_in)


# ----------------------------------------------------------------------------------
# Module port (parameter setup + build_targets are host-side glue, losses go to Pallas)
# ----------------------------------------------------------------------------------
def smooth_BCE(eps=0.1):
    return 1.0 - 0.5 * eps, 0.5 * eps


def xyxy2cxcywh_np(boxes):
    out = np.zeros_like(boxes, dtype=np.float32)
    out[:, 0] = (boxes[:, 0] + boxes[:, 2]) * 0.5
    out[:, 1] = (boxes[:, 1] + boxes[:, 3]) * 0.5
    out[:, 2] = boxes[:, 2] - boxes[:, 0]
    out[:, 3] = boxes[:, 3] - boxes[:, 1]
    return out


class YoloLossPallas:
    sort_obj_iou = False

    def __init__(self, anchors, num_classes, hyp, autobalance=False):
        if anchors is None:
            anchors = [[10, 13, 16, 30, 33, 23],
                       [30, 61, 62, 45, 59, 119],
                       [116, 90, 156, 198, 373, 326]]
        self.stride = np.array([256.0 / x for x in [32.0, 16.0, 8.0]], np.float32)  # [8,16,32]
        self.cp, self.cn = smooth_BCE(eps=hyp.get('label_smoothing', 0.0))
        self.na = len(anchors[0]) // 2
        self.nc = num_classes
        self.nl = len(anchors)
        a = np.asarray(anchors, np.float32).reshape(self.nl, -1, 2)
        # check_anchor_order: flip if anchor-area order disagrees with stride order
        mean_area = a.prod(-1).mean(-1)
        if np.sign(mean_area[-1] - mean_area[0]) != np.sign(self.stride[-1] - self.stride[0]):
            a = a[::-1].copy()
        self.anchors = a / self.stride.reshape(-1, 1, 1)
        self.hyp = hyp
        self.gr = 1.0
        self.autobalance = autobalance  # TODO(synk): autobalance branch (runtime balance update) not implemented
        self.balance = {3: [4.0, 1.0, 0.4]}.get(self.nl, [4.0, 1.0, 0.25, 0.06, 0.02])
        # TODO(synk): BCE_FocalLoss branch (hyp['fl_gamma'] > 0) not implemented; gamma==0 path only.

    # ---- forward -------------------------------------------------------------
    def __call__(self, preds, targets):
        tcls, tbox, indices, anch = self.build_targets(preds, targets)
        nl = self.nl
        lbox = jnp.zeros((), jnp.float32)
        lcls = jnp.zeros((), jnp.float32)
        tobjs = [jnp.zeros(preds[i].shape[:4], dtype=preds[i].dtype) for i in range(nl)]

        active = [i for i in range(nl) if indices[i][0].shape[0] > 0]
        if active:
            # per-level bucketed padding (power of two >= 1024 -> (8,128)-aligned blocks)
            ns, npads, offs = {}, {}, {}
            off = 0
            for i in active:
                n = indices[i][0].shape[0]
                ns[i] = n
                npads[i] = _bucket_pow2_1024(n)
                offs[i] = off
                off += npads[i]
            ntot = off
            rows = ntot // 128
            no = 5 + self.nc

            # device-side gather of the matched predictions (padded rows reuse index 0)
            p_parts = []
            for i in active:
                b, a, gj, gi = indices[i]
                n, npad = ns[i], npads[i]

                def pad_idx(v, npad=npad, n=n):
                    out = np.zeros(npad, np.int64)
                    out[:n] = v
                    return out

                p_parts.append(preds[i][pad_idx(b), pad_idx(a), pad_idx(gj), pad_idx(gi)])
            p_cat = jnp.concatenate(p_parts, axis=0) if len(p_parts) > 1 else p_parts[0]
            p_in = p_cat.T.reshape(no, rows, 128)                     # lane-dense on targets

            # host-built target tensors, fused over levels, in the lane-dense layout
            tb_np = np.zeros((ntot, 4), np.float32)
            tb_np[:, 2:] = 1.0                                        # padded wh = 1 (safe divides)
            an_np = np.ones((ntot, 2), np.float32)
            tc_np = np.zeros((ntot,), np.int32)
            w_np = np.zeros((ntot,), np.float32)
            for i in active:
                o, n = offs[i], ns[i]
                tb_np[o:o + n] = tbox[i]
                an_np[o:o + n] = anch[i]
                tc_np[o:o + n] = tcls[i].astype(np.int32)
                w_np[o:o + n] = 1.0 / n
            tb_in = jnp.asarray(np.ascontiguousarray(tb_np.T).reshape(4, rows, 128))
            an_in = jnp.asarray(np.ascontiguousarray(an_np.T).reshape(2, rows, 128))
            tc_in = jnp.asarray(tc_np.reshape(rows, 128))
            w_in = jnp.asarray(w_np.reshape(rows, 128))

            iou_out, lbox_p, lcls_p = target_losses_fused(
                p_in, tb_in, an_in, tc_in, w_in, rows, no, self.nc,
                self.hyp['cls_pw'], self.cp, self.cn)

            lbox = jnp.sum(lbox_p)
            if self.nc > 1:
                lcls = jnp.sum(lcls_p) / float(self.nc)

            iou_flat = iou_out.reshape(-1)
            for i in active:
                b, a, gj, gi = indices[i]
                o, n = offs[i], ns[i]
                iou_i = jnp.maximum(iou_flat[o:o + n], 0.0).astype(preds[i].dtype)
                # duplicate indices: unspecified winner (matches torch index-assignment semantics)
                tobjs[i] = tobjs[i].at[b, a, gj, gi].set(iou_i)

        # per-level gridded objectness BCE (balance[i]/numel folded into the kernel weight)
        lobj = jnp.zeros((), jnp.float32)
        for i in range(nl):
            lobj = lobj + obj_bce_level(preds[i][..., 4].reshape(-1), tobjs[i].reshape(-1),
                                        self.balance[i], self.hyp['obj_pw'])

        lbox = lbox * self.hyp['box']
        lobj = lobj * self.hyp['obj']
        lcls = lcls * self.hyp['cls']
        bs = preds[-1].shape[0]
        return {'reg_loss': lbox * bs / 4,
                'obj_loss': lobj * bs / 4,
                'cls_loss': lcls * bs / 4}

    # ---- build_targets (host-side numpy: data-dependent shapes) ----------------
    def build_targets(self, preds, targets):
        na = self.na
        new_targets = []
        for i, t in enumerate(targets):
            if t['labels'] is None or len(t['labels']) == 0:
                lab = np.zeros((0, 6), np.float32)
            else:
                labels = np.asarray(t['labels'])
                boxes = np.asarray(t['boxes'], np.float32)
                lab = np.zeros((len(labels), 6), np.float32)
                lab[:, 1] = labels.astype(np.float32)
                lab[:, 2:] = xyxy2cxcywh_np(boxes)
            lab[:, 0] = i
            new_targets.append(lab)
        tgt = np.concatenate(new_targets, 0)
        nt = tgt.shape[0]

        tcls, tbox, indices, anch = [], [], [], []
        gain = np.ones(7, np.float32)
        ai = np.tile(np.arange(na, dtype=np.float32).reshape(na, 1), (1, nt))
        tgt7 = np.concatenate((np.tile(tgt[None], (na, 1, 1)), ai[..., None]), 2)  # (na, nt, 7)
        g = 0.5
        off = np.array([[0, 0], [1, 0], [0, 1], [-1, 0], [0, -1]], np.float32) * g

        for i in range(self.nl):
            anchors_i = self.anchors[i]
            shp = preds[i].shape                                  # (bs, na, H, W, no)
            gain[2:6] = np.array([shp[3], shp[2], shp[3], shp[2]], np.float32)
            t = tgt7 * gain
            if nt:
                r = t[..., 4:6] / anchors_i[:, None]
                j = np.maximum(r, 1.0 / r).max(2) < self.hyp['anchor_t']
                t = t[j]
                gxy = t[:, 2:4]
                gxi = gain[[2, 3]] - gxy
                jk = ((gxy % 1.0 < g) & (gxy > 1.0)).T
                lm = ((gxi % 1.0 < g) & (gxi > 1.0)).T
                jm = np.stack((np.ones_like(jk[0]), jk[0], jk[1], lm[0], lm[1]))
                t = np.tile(t[None], (5, 1, 1))[jm]
                offsets = (np.zeros_like(gxy)[None] + off[:, None])[jm]
            else:
                t = tgt7[0]
                offsets = np.zeros((0, 2), np.float32)
            b = t[:, 0].astype(np.int64)
            c = t[:, 1].astype(np.int64)
            gxy = t[:, 2:4]
            gwh = t[:, 4:6]
            a = t[:, 6].astype(np.int64)
            gij = (gxy - offsets).astype(np.int64)                # trunc (== torch .long(), values >= 0)
            gij[:, 0] = np.clip(gij[:, 0], 0, int(gain[2]) - 1)   # gi
            gij[:, 1] = np.clip(gij[:, 1], 0, int(gain[3]) - 1)   # gj
            gi, gj = gij[:, 0], gij[:, 1]
            indices.append((b, a, gj, gi))
            tbox.append(np.concatenate((gxy - gij.astype(np.float32), gwh), 1).astype(np.float32))
            anch.append(anchors_i[a].astype(np.float32))
            tcls.append(c)
        return tcls, tbox, indices, anch


# ----------------------------------------------------------------------------------
# pure-numpy reference (same math in float64, np.arctan) used only to validate the kernels
# ----------------------------------------------------------------------------------
def _np_ciou(box1, box2, eps=1e-7):
    px, py, pw, ph = (box1[:, k] for k in range(4))
    tx, ty, tw, th = (box2[:, k] for k in range(4))
    b1x1, b1x2 = px - pw / 2, px + pw / 2
    b1y1, b1y2 = py - ph / 2, py + ph / 2
    b2x1, b2x2 = tx - tw / 2, tx + tw / 2
    b2y1, b2y2 = ty - th / 2, ty + th / 2
    inter = np.clip(np.minimum(b1x2, b2x2) - np.maximum(b1x1, b2x1), 0, None) * \
            np.clip(np.minimum(b1y2, b2y2) - np.maximum(b1y1, b2y1), 0, None)
    union = pw * ph + tw * th - inter + eps
    iou = inter / union
    cw = np.maximum(b1x2, b2x2) - np.minimum(b1x1, b2x1)
    ch = np.maximum(b1y2, b2y2) - np.minimum(b1y1, b2y1)
    c2 = cw * cw + ch * ch + eps
    rho2 = ((b2x1 + b2x2 - b1x1 - b1x2) ** 2 + (b2y1 + b2y2 - b1y1 - b1y2) ** 2) / 4.0
    v = (4.0 / math.pi ** 2) * (np.arctan(tw / (th + eps)) - np.arctan(pw / (ph + eps))) ** 2
    alpha = v / (v - iou + (1.0 + eps))
    return iou - (rho2 / c2 + v * alpha)


def reference_forward(module, preds, targets):
    preds_np = [np.asarray(p) for p in preds]
    tcls, tbox, indices, anch = module.build_targets(preds_np, targets)
    sp = lambda z: np.maximum(z, 0.0) + np.log1p(np.exp(-np.abs(z)))
    lcls = lbox = lobj = 0.0
    for i, pi in enumerate(preds_np):
        b, a, gj, gi = indices[i]
        tobj = np.zeros(pi.shape[:4], np.float64)
        n = b.shape[0]
        if n:
            ps = pi[b, a, gj, gi].astype(np.float64)
            pxy = 1.0 / (1.0 + np.exp(-ps[:, 0:2])) * 2.0 - 0.5
            pwh = (1.0 / (1.0 + np.exp(-ps[:, 2:4])) * 2.0) ** 2 * anch[i]
            ciou = _np_ciou(np.concatenate([pxy, pwh], 1), tbox[i].astype(np.float64))
            lbox += (1.0 - ciou).mean()
            tobj[b, a, gj, gi] = np.clip(ciou, 0, None)
            if module.nc > 1:
                t = np.full((n, module.nc), module.cn)
                t[np.arange(n), tcls[i]] = module.cp
                pcls = ps[:, 5:5 + module.nc]
                pw_ = module.hyp['cls_pw']
                lcls += (pw_ * t * sp(-pcls) + (1 - t) * sp(pcls)).mean()
        x = pi[..., 4].astype(np.float64)
        pw_ = module.hyp['obj_pw']
        obji = (pw_ * tobj * sp(-x) + (1 - tobj) * sp(x)).mean()
        lobj += obji * module.balance[i]
    bs = preds_np[-1].shape[0]
    return {'reg_loss': lbox * module.hyp['box'] * bs / 4,
            'obj_loss': lobj * module.hyp['obj'] * bs / 4,
            'cls_loss': lcls * module.hyp['cls'] * bs / 4}


# ----------------------------------------------------------------------------------
if __name__ == "__main__":
    B, na, nc = 2, 3, 4
    no = 5 + nc
    grids = [8, 4, 2]   # strides 8 / 16 / 32 (64px image)
    hyp = dict(label_smoothing=0.0, fl_alpha=0.25, fl_gamma=0.0,
               cls_pw=1.0, obj_pw=1.0, box=0.05, obj=1.0, cls=0.5, anchor_t=4.0)

    loss_mod = YoloLossPallas(None, nc, hyp, autobalance=False)

    key = jax.random.PRNGKey(0)
    preds = []
    for g in grids:
        key, sub = jax.random.split(key)
        preds.append(jax.random.normal(sub, (B, na, g, g, no), jnp.float32))

    targets = [
        {'labels': np.array([1, 3], np.int64),
         'boxes': np.array([[0.06, 0.12, 0.52, 0.48],
                            [0.55, 0.58, 0.92, 0.95]], np.float32)},
        {'labels': np.array([0], np.int64),
         'boxes': np.array([[0.22, 0.34, 0.62, 0.77]], np.float32)},
    ]

    out = loss_mod(preds, targets)
    out = {k: jax.block_until_ready(v) for k, v in out.items()}

    ref = reference_forward(loss_mod, preds, targets)
    for k in out:
        a, r = float(out[k]), float(ref[k])
        assert np.isfinite(a), (k, a)
        assert abs(a - r) <= 1e-3 * max(1.0, abs(r)) + 1e-4, (k, a, r)

    print("KERNEL_OK")
</pallas_src>

<mosaic_0001>
module attributes {stable_mosaic.version = 11 : i64} {
  func.func @_target_kernel(%arg0: i32, %arg1: memref<9x8x128xf32, #tpu.memory_space<vmem>>, %arg2: memref<4x8x128xf32, #tpu.memory_space<vmem>>, %arg3: memref<2x8x128xf32, #tpu.memory_space<vmem>>, %arg4: memref<8x128xi32, #tpu.memory_space<vmem>>, %arg5: memref<8x128xf32, #tpu.memory_space<vmem>>, %arg6: memref<8x128xf32, #tpu.memory_space<vmem>>, %arg7: memref<8x128xf32, #tpu.memory_space<vmem>>, %arg8: memref<8x128xf32, #tpu.memory_space<vmem>>) attributes {dimension_semantics = [#tpu.dimension_semantics<parallel>], iteration_bounds = array<i64: 3>, scalar_prefetch = 0 : i64, scratch_operands = 0 : i64, tpu.core_type = #tpu.core_type<tc>, window_params = [{transform_indices = @transform_0, window_bounds = array<i64: 9, 8, 128>}, {transform_indices = @transform_1, window_bounds = array<i64: 4, 8, 128>}, {transform_indices = @transform_2, window_bounds = array<i64: 2, 8, 128>}, {transform_indices = @transform_3, window_bounds = array<i64: 8, 128>}, {transform_indices = @transform_4, window_bounds = array<i64: 8, 128>}, {transform_indices = @transform_5, window_bounds = array<i64: 8, 128>}, {transform_indices = @transform_6, window_bounds = array<i64: 8, 128>}, {transform_indices = @transform_7, window_bounds = array<i64: 8, 128>}]} {
    %c0 = arith.constant 0 : index
    %c0_0 = arith.constant 0 : index
    %0 = vector.load %arg5[%c0, %c0_0] : memref<8x128xf32, #tpu.memory_space<vmem>>, vector<8x128xf32>
    %c0_1 = arith.constant 0 : index
    %c0_2 = arith.constant 0 : index
    %c0_3 = arith.constant 0 : index
    %1 = vector.load %arg1[%c0_1, %c0_2, %c0_3] : memref<9x8x128xf32, #tpu.memory_space<vmem>>, vector<4x8x128xf32>
    %cst = arith.constant 0.000000e+00 : f32
    %2 = vector.broadcast %cst : f32 to vector<4x8x128xf32>
    %3 = arith.subf %2, %1 : vector<4x8x128xf32>
    %4 = math.exp %3 : vector<4x8x128xf32>
    %cst_4 = arith.constant 1.000000e+00 : f32
    %5 = vector.broadcast %cst_4 : f32 to vector<4x8x128xf32>
    %6 = arith.addf %5, %4 : vector<4x8x128xf32>
    %7 = tpu.reciprocal %6 {approx = true} : vector<4x8x128xf32> -> vector<4x8x128xf32>
    %8 = vector.extract_strided_slice %7 {offsets = [0, 0, 0], sizes = [1, 8, 128], strides = [1, 1, 1]} : vector<4x8x128xf32> to vector<1x8x128xf32>
    %9 = vector.shape_cast %8 : vector<1x8x128xf32> to vector<8x128xf32>
    %cst_5 = arith.constant 2.000000e+00 : f32
    %10 = vector.broadcast %cst_5 : f32 to vector<8x128xf32>
    %11 = arith.mulf %9, %10 : vector<8x128xf32>
    %cst_6 = arith.constant 5.000000e-01 : f32
    %12 = vector.broadcast %cst_6 : f32 to vector<8x128xf32>
    %13 = arith.subf %11, %12 : vector<8x128xf32>
    %14 = vector.extract_strided_slice %7 {offsets = [1, 0, 0], sizes = [1, 8, 128], strides = [1, 1, 1]} : vector<4x8x128xf32> to vector<1x8x128xf32>
    %15 = vector.shape_cast %14 : vector<1x8x128xf32> to vector<8x128xf32>
    %cst_7 = arith.constant 2.000000e+00 : f32
    %16 = vector.broadcast %cst_7 : f32 to vector<8x128xf32>
    %17 = arith.mulf %15, %16 : vector<8x128xf32>
    %cst_8 = arith.constant 5.000000e-01 : f32
    %18 = vector.broadcast %cst_8 : f32 to vector<8x128xf32>
    %19 = arith.subf %17, %18 : vector<8x128xf32>
    %20 = vector.extract_strided_slice %7 {offsets = [2, 0, 0], sizes = [1, 8, 128], strides = [1, 1, 1]} : vector<4x8x128xf32> to vector<1x8x128xf32>
    %21 = vector.shape_cast %20 : vector<1x8x128xf32> to vector<8x128xf32>
    %cst_9 = arith.constant 2.000000e+00 : f32
    %22 = vector.broadcast %cst_9 : f32 to vector<8x128xf32>
    %23 = arith.mulf %21, %22 : vector<8x128xf32>
    %24 = vector.extract_strided_slice %7 {offsets = [3, 0, 0], sizes = [1, 8, 128], strides = [1, 1, 1]} : vector<4x8x128xf32> to vector<1x8x128xf32>
    %25 = vector.shape_cast %24 : vector<1x8x128xf32> to vector<8x128xf32>
    %cst_10 = arith.constant 2.000000e+00 : f32
    %26 = vector.broadcast %cst_10 : f32 to vector<8x128xf32>
    %27 = arith.mulf %25, %26 : vector<8x128xf32>
    %28 = arith.mulf %23, %23 : vector<8x128xf32>
    %c0_11 = arith.constant 0 : index
    %c0_12 = arith.constant 0 : index
    %c0_13 = arith.constant 0 : index
    %29 = vector.load %arg3[%c0_11, %c0_12, %c0_13] : memref<2x8x128xf32, #tpu.memory_space<vmem>>, vector<1x8x128xf32>
    %30 = vector.shape_cast %29 : vector<1x8x128xf32> to vector<8x128xf32>
    %31 = arith.mulf %28, %30 : vector<8x128xf32>
    %32 = arith.mulf %27, %27 : vector<8x128xf32>
    %c1 = arith.constant 1 : index
    %c0_14 = arith.constant 0 : index
    %c0_15 = arith.constant 0 : index
    %33 = vector.load %arg3[%c1, %c0_14, %c0_15] : memref<2x8x128xf32, #tpu.memory_space<vmem>>, vector<1x8x128xf32>
    %34 = vector.shape_cast %33 : vector<1x8x128xf32> to vector<8x128xf32>
    %35 = arith.mulf %32, %34 : vector<8x128xf32>
    %c0_16 = arith.constant 0 : index
    %c0_17 = arith.constant 0 : index
    %c0_18 = arith.constant 0 : index
    %36 = vector.load %arg2[%c0_16, %c0_17, %c0_18] : memref<4x8x128xf32, #tpu.memory_space<vmem>>, vector<1x8x128xf32>
    %37 = vector.shape_cast %36 : vector<1x8x128xf32> to vector<8x128xf32>
    %c1_19 = arith.constant 1 : index
    %c0_20 = arith.constant 0 : index
    %c0_21 = arith.constant 0 : index
    %38 = vector.load %arg2[%c1_19, %c0_20, %c0_21] : memref<4x8x128xf32, #tpu.memory_space<vmem>>, vector<1x8x128xf32>
    %39 = vector.shape_cast %38 : vector<1x8x128xf32> to vector<8x128xf32>
    %c2 = arith.constant 2 : index
    %c0_22 = arith.constant 0 : index
    %c0_23 = arith.constant 0 : index
    %40 = vector.load %arg2[%c2, %c0_22, %c0_23] : memref<4x8x128xf32, #tpu.memory_space<vmem>>, vector<1x8x128xf32>
    %41 = vector.shape_cast %40 : vector<1x8x128xf32> to vector<8x128xf32>
    %c3 = arith.constant 3 : index
    %c0_24 = arith.constant 0 : index
    %c0_25 = arith.constant 0 : index
    %42 = vector.load %arg2[%c3, %c0_24, %c0_25] : memref<4x8x128xf32, #tpu.memory_space<vmem>>, vector<1x8x128xf32>
    %43 = vector.shape_cast %42 : vector<1x8x128xf32> to vector<8x128xf32>
    %cst_26 = arith.constant 5.000000e-01 : f32
    %44 = vector.broadcast %cst_26 : f32 to vector<8x128xf32>
    %45 = arith.mulf %31, %44 : vector<8x128xf32>
    %46 = arith.subf %13, %45 : vector<8x128xf32>
    %cst_27 = arith.constant 5.000000e-01 : f32
    %47 = vector.broadcast %cst_27 : f32 to vector<8x128xf32>
    %48 = arith.mulf %31, %47 : vector<8x128xf32>
    %49 = arith.addf %13, %48 : vector<8x128xf32>
    %cst_28 = arith.constant 5.000000e-01 : f32
    %50 = vector.broadcast %cst_28 : f32 to vector<8x128xf32>
    %51 = arith.mulf %35, %50 : vector<8x128xf32>
    %52 = arith.subf %19, %51 : vector<8x128xf32>
    %cst_29 = arith.constant 5.000000e-01 : f32
    %53 = vector.broadcast %cst_29 : f32 to vector<8x128xf32>
    %54 = arith.mulf %35, %53 : vector<8x128xf32>
    %55 = arith.addf %19, %54 : vector<8x128xf32>
    %cst_30 = arith.constant 5.000000e-01 : f32
    %56 = vector.broadcast %cst_30 : f32 to vector<8x128xf32>
    %57 = arith.mulf %41, %56 : vector<8x128xf32>
    %58 = arith.subf %37, %57 : vector<8x128xf32>
    %cst_31 = arith.constant 5.000000e-01 : f32
    %59 = vector.broadcast %cst_31 : f32 to vector<8x128xf32>
    %60 = arith.mulf %41, %59 : vector<8x128xf32>
    %61 = arith.addf %37, %60 : vector<8x128xf32>
    %cst_32 = arith.constant 5.000000e-01 : f32
    %62 = vector.broadcast %cst_32 : f32 to vector<8x128xf32>
    %63 = arith.mulf %43, %62 : vector<8x128xf32>
    %64 = arith.subf %39, %63 : vector<8x128xf32>
    %cst_33 = arith.constant 5.000000e-01 : f32
    %65 = vector.broadcast %cst_33 : f32 to vector<8x128xf32>
    %66 = arith.mulf %43, %65 : vector<8x128xf32>
    %67 = arith.addf %39, %66 : vector<8x128xf32>
    %68 = arith.minimumf %49, %61 : vector<8x128xf32>
    %69 = arith.maximumf %46, %58 : vector<8x128xf32>
    %70 = arith.subf %68, %69 : vector<8x128xf32>
    %cst_34 = arith.constant 0.000000e+00 : f32
    %71 = vector.broadcast %cst_34 : f32 to vector<8x128xf32>
    %72 = arith.maximumf %70, %71 : vector<8x128xf32>
    %73 = arith.minimumf %55, %67 : vector<8x128xf32>
    %74 = arith.maximumf %52, %64 : vector<8x128xf32>
    %75 = arith.subf %73, %74 : vector<8x128xf32>
    %cst_35 = arith.constant 0.000000e+00 : f32
    %76 = vector.broadcast %cst_35 : f32 to vector<8x128xf32>
    %77 = arith.maximumf %75, %76 : vector<8x128xf32>
    %78 = arith.mulf %72, %77 : vector<8x128xf32>
    %79 = arith.mulf %31, %35 : vector<8x128xf32>
    %80 = arith.mulf %41, %43 : vector<8x128xf32>
    %81 = arith.addf %79, %80 : vector<8x128xf32>
    %82 = arith.subf %81, %78 : vector<8x128xf32>
    %cst_36 = arith.constant 1.000000e-07 : f32
    %83 = vector.broadcast %cst_36 : f32 to vector<8x128xf32>
    %84 = arith.addf %82, %83 : vector<8x128xf32>
    %85 = tpu.reciprocal %84 {approx = true} : vector<8x128xf32> -> vector<8x128xf32>
    %86 = arith.mulf %78, %85 : vector<8x128xf32>
    %87 = arith.maximumf %49, %61 : vector<8x128xf32>
    %88 = arith.minimumf %46, %58 : vector<8x128xf32>
    %89 = arith.subf %87, %88 : vector<8x128xf32>
    %90 = arith.maximumf %55, %67 : vector<8x128xf32>
    %91 = arith.minimumf %52, %64 : vector<8x128xf32>
    %92 = arith.subf %90, %91 : vector<8x128xf32>
    %93 = arith.mulf %89, %89 : vector<8x128xf32>
    %94 = arith.mulf %92, %92 : vector<8x128xf32>
    %95 = arith.addf %93, %94 : vector<8x128xf32>
    %cst_37 = arith.constant 1.000000e-07 : f32
    %96 = vector.broadcast %cst_37 : f32 to vector<8x128xf32>
    %97 = arith.addf %95, %96 : vector<8x128xf32>
    %98 = arith.addf %58, %61 : vector<8x128xf32>
    %99 = arith.subf %98, %46 : vector<8x128xf32>
    %100 = arith.subf %99, %49 : vector<8x128xf32>
    %101 = arith.mulf %100, %100 : vector<8x128xf32>
    %102 = arith.addf %64, %67 : vector<8x128xf32>
    %103 = arith.subf %102, %52 : vector<8x128xf32>
    %104 = arith.subf %103, %55 : vector<8x128xf32>
    %105 = arith.mulf %104, %104 : vector<8x128xf32>
    %106 = arith.addf %101, %105 : vector<8x128xf32>
    %cst_38 = arith.constant 2.500000e-01 : f32
    %107 = vector.broadcast %cst_38 : f32 to vector<8x128xf32>
    %108 = arith.mulf %106, %107 : vector<8x128xf32>
    %cst_39 = arith.constant 1.000000e-07 : f32
    %109 = vector.broadcast %cst_39 : f32 to vector<8x128xf32>
    %110 = arith.addf %43, %109 : vector<8x128xf32>
    %111 = tpu.reciprocal %110 {approx = true} : vector<8x128xf32> -> vector<8x128xf32>
    %112 = arith.mulf %41, %111 : vector<8x128xf32>
    %cst_40 = arith.constant 0.000000e+00 : f32
    %113 = vector.broadcast %cst_40 : f32 to vector<8x128xf32>
    %114 = arith.cmpf olt, %112, %113 : vector<8x128xf32>
    %cst_41 = arith.constant -1.000000e+00 : f32
    %cst_42 = arith.constant 1.000000e+00 : f32
    %115 = vector.broadcast %cst_41 : f32 to vector<8x128xf32>
    %116 = vector.broadcast %cst_42 : f32 to vector<8x128xf32>
    %117 = arith.select %114, %115, %116 : vector<8x128xi1>, vector<8x128xf32>
    %118 = math.absf %112 : vector<8x128xf32>
    %cst_43 = arith.constant 1.000000e+00 : f32
    %119 = vector.broadcast %cst_43 : f32 to vector<8x128xf32>
    %120 = arith.cmpf ogt, %118, %119 : vector<8x128xf32>
    %cst_44 = arith.constant 1.000000e-30 : f32
    %121 = vector.broadcast %cst_44 : f32 to vector<8x128xf32>
    %122 = arith.maximumf %118, %121 : vector<8x128xf32>
    %123 = tpu.reciprocal %122 {approx = true} : vector<8x128xf32> -> vector<8x128xf32>
    %124 = arith.select %120, %123, %118 : vector<8x128xi1>, vector<8x128xf32>
    %125 = arith.mulf %124, %124 : vector<8x128xf32>
    %cst_45 = arith.constant 1.000000e+00 : f32
    %126 = vector.broadcast %cst_45 : f32 to vector<8x128xf32>
    %127 = arith.addf %126, %125 : vector<8x128xf32>
    %128 = math.sqrt %127 : vector<8x128xf32>
    %cst_46 = arith.constant 1.000000e+00 : f32
    %129 = vector.broadcast %cst_46 : f32 to vector<8x128xf32>
    %130 = arith.addf %129, %128 : vector<8x128xf32>
    %131 = tpu.reciprocal %130 {approx = true} : vector<8x128xf32> -> vector<8x128xf32>
    %132 = arith.mulf %124, %131 : vector<8x128xf32>
    %133 = arith.mulf %132, %132 : vector<8x128xf32>
    %cst_47 = arith.constant 1.000000e+00 : f32
    %134 = vector.broadcast %cst_47 : f32 to vector<8x128xf32>
    %135 = arith.addf %134, %133 : vector<8x128xf32>
    %136 = math.sqrt %135 : vector<8x128xf32>
    %cst_48 = arith.constant 1.000000e+00 : f32
    %137 = vector.broadcast %cst_48 : f32 to vector<8x128xf32>
    %138 = arith.addf %137, %136 : vector<8x128xf32>
    %139 = tpu.reciprocal %138 {approx = true} : vector<8x128xf32> -> vector<8x128xf32>
    %140 = arith.mulf %132, %139 : vector<8x128xf32>
    %141 = arith.mulf %140, %140 : vector<8x128xf32>
    %cst_49 = arith.constant 0.111111112 : f32
    %142 = vector.broadcast %cst_49 : f32 to vector<8x128xf32>
    %143 = arith.mulf %141, %142 : vector<8x128xf32>
    %cst_50 = arith.constant -0.142857149 : f32
    %144 = vector.broadcast %cst_50 : f32 to vector<8x128xf32>
    %145 = arith.addf %144, %143 : vector<8x128xf32>
    %146 = arith.mulf %141, %145 : vector<8x128xf32>
    %cst_51 = arith.constant 2.000000e-01 : f32
    %147 = vector.broadcast %cst_51 : f32 to vector<8x128xf32>
    %148 = arith.addf %147, %146 : vector<8x128xf32>
    %149 = arith.mulf %141, %148 : vector<8x128xf32>
    %cst_52 = arith.constant -0.333333343 : f32
    %150 = vector.broadcast %cst_52 : f32 to vector<8x128xf32>
    %151 = arith.addf %150, %149 : vector<8x128xf32>
    %152 = arith.mulf %141, %151 : vector<8x128xf32>
    %cst_53 = arith.constant 1.000000e+00 : f32
    %153 = vector.broadcast %cst_53 : f32 to vector<8x128xf32>
    %154 = arith.addf %153, %152 : vector<8x128xf32>
    %155 = arith.mulf %140, %154 : vector<8x128xf32>
    %cst_54 = arith.constant 4.000000e+00 : f32
    %156 = vector.broadcast %cst_54 : f32 to vector<8x128xf32>
    %157 = arith.mulf %156, %155 : vector<8x128xf32>
    %cst_55 = arith.constant 1.57079637 : f32
    %158 = vector.broadcast %cst_55 : f32 to vector<8x128xf32>
    %159 = arith.subf %158, %157 : vector<8x128xf32>
    %160 = arith.select %120, %159, %157 : vector<8x128xi1>, vector<8x128xf32>
    %161 = arith.mulf %117, %160 : vector<8x128xf32>
    %cst_56 = arith.constant 1.000000e-07 : f32
    %162 = vector.broadcast %cst_56 : f32 to vector<8x128xf32>
    %163 = arith.addf %35, %162 : vector<8x128xf32>
    %164 = tpu.reciprocal %163 {approx = true} : vector<8x128xf32> -> vector<8x128xf32>
    %165 = arith.mulf %31, %164 : vector<8x128xf32>
    %cst_57 = arith.constant 0.000000e+00 : f32
    %166 = vector.broadcast %cst_57 : f32 to vector<8x128xf32>
    %167 = arith.cmpf olt, %165, %166 : vector<8x128xf32>
    %cst_58 = arith.constant -1.000000e+00 : f32
    %cst_59 = arith.constant 1.000000e+00 : f32
    %168 = vector.broadcast %cst_58 : f32 to vector<8x128xf32>
    %169 = vector.broadcast %cst_59 : f32 to vector<8x128xf32>
    %170 = arith.select %167, %168, %169 : vector<8x128xi1>, vector<8x128xf32>
    %171 = math.absf %165 : vector<8x128xf32>
    %cst_60 = arith.constant 1.000000e+00 : f32
    %172 = vector.broadcast %cst_60 : f32 to vector<8x128xf32>
    %173 = arith.cmpf ogt, %171, %172 : vector<8x128xf32>
    %cst_61 = arith.constant 1.000000e-30 : f32
    %174 = vector.broadcast %cst_61 : f32 to vector<8x128xf32>
    %175 = arith.maximumf %171, %174 : vector<8x128xf32>
    %176 = tpu.reciprocal %175 {approx = true} : vector<8x128xf32> -> vector<8x128xf32>
    %177 = arith.select %173, %176, %171 : vector<8x128xi1>, vector<8x128xf32>
    %178 = arith.mulf %177, %177 : vector<8x128xf32>
    %cst_62 = arith.constant 1.000000e+00 : f32
    %179 = vector.broadcast %cst_62 : f32 to vector<8x128xf32>
    %180 = arith.addf %179, %178 : vector<8x128xf32>
    %181 = math.sqrt %180 : vector<8x128xf32>
    %cst_63 = arith.constant 1.000000e+00 : f32
    %182 = vector.broadcast %cst_63 : f32 to vector<8x128xf32>
    %183 = arith.addf %182, %181 : vector<8x128xf32>
    %184 = tpu.reciprocal %183 {approx = true} : vector<8x128xf32> -> vector<8x128xf32>
    %185 = arith.mulf %177, %184 : vector<8x128xf32>
    %186 = arith.mulf %185, %185 : vector<8x128xf32>
    %cst_64 = arith.constant 1.000000e+00 : f32
    %187 = vector.broadcast %cst_64 : f32 to vector<8x128xf32>
    %188 = arith.addf %187, %186 : vector<8x128xf32>
    %189 = math.sqrt %188 : vector<8x128xf32>
    %cst_65 = arith.constant 1.000000e+00 : f32
    %190 = vector.broadcast %cst_65 : f32 to vector<8x128xf32>
    %191 = arith.addf %190, %189 : vector<8x128xf32>
    %192 = tpu.reciprocal %191 {approx = true} : vector<8x128xf32> -> vector<8x128xf32>
    %193 = arith.mulf %185, %192 : vector<8x128xf32>
    %194 = arith.mulf %193, %193 : vector<8x128xf32>
    %cst_66 = arith.constant 0.111111112 : f32
    %195 = vector.broadcast %cst_66 : f32 to vector<8x128xf32>
    %196 = arith.mulf %194, %195 : vector<8x128xf32>
    %cst_67 = arith.constant -0.142857149 : f32
    %197 = vector.broadcast %cst_67 : f32 to vector<8x128xf32>
    %198 = arith.addf %197, %196 : vector<8x128xf32>
    %199 = arith.mulf %194, %198 : vector<8x128xf32>
    %cst_68 = arith.constant 2.000000e-01 : f32
    %200 = vector.broadcast %cst_68 : f32 to vector<8x128xf32>
    %201 = arith.addf %200, %199 : vector<8x128xf32>
    %202 = arith.mulf %194, %201 : vector<8x128xf32>
    %cst_69 = arith.constant -0.333333343 : f32
    %203 = vector.broadcast %cst_69 : f32 to vector<8x128xf32>
    %204 = arith.addf %203, %202 : vector<8x128xf32>
    %205 = arith.mulf %194, %204 : vector<8x128xf32>
    %cst_70 = arith.constant 1.000000e+00 : f32
    %206 = vector.broadcast %cst_70 : f32 to vector<8x128xf32>
    %207 = arith.addf %206, %205 : vector<8x128xf32>
    %208 = arith.mulf %193, %207 : vector<8x128xf32>
    %cst_71 = arith.constant 4.000000e+00 : f32
    %209 = vector.broadcast %cst_71 : f32 to vector<8x128xf32>
    %210 = arith.mulf %209, %208 : vector<8x128xf32>
    %cst_72 = arith.constant 1.57079637 : f32
    %211 = vector.broadcast %cst_72 : f32 to vector<8x128xf32>
    %212 = arith.subf %211, %210 : vector<8x128xf32>
    %213 = arith.select %173, %212, %210 : vector<8x128xi1>, vector<8x128xf32>
    %214 = arith.mulf %170, %213 : vector<8x128xf32>
    %215 = arith.subf %161, %214 : vector<8x128xf32>
    %216 = arith.mulf %215, %215 : vector<8x128xf32>
    %cst_73 = arith.constant 0.405284733 : f32
    %217 = vector.broadcast %cst_73 : f32 to vector<8x128xf32>
    %218 = arith.mulf %217, %216 : vector<8x128xf32>
    %219 = arith.subf %218, %86 : vector<8x128xf32>
    %cst_74 = arith.constant 1.00000012 : f32
    %220 = vector.broadcast %cst_74 : f32 to vector<8x128xf32>
    %221 = arith.addf %219, %220 : vector<8x128xf32>
    %222 = tpu.reciprocal %221 {approx = true} : vector<8x128xf32> -> vector<8x128xf32>
    %223 = arith.mulf %218, %222 : vector<8x128xf32>
    %224 = tpu.reciprocal %97 {approx = true} : vector<8x128xf32> -> vector<8x128xf32>
    %225 = arith.mulf %108, %224 : vector<8x128xf32>
    %226 = arith.mulf %218, %223 : vector<8x128xf32>
    %227 = arith.addf %225, %226 : vector<8x128xf32>
    %228 = arith.subf %86, %227 : vector<8x128xf32>
    %c0_75 = arith.constant 0 : index
    %c0_76 = arith.constant 0 : index
    %229 = vector.load %arg6[%c0_75, %c0_76] : memref<8x128xf32, #tpu.memory_space<vmem>>, vector<8x128xf32>
    tpu.vector_store %arg6[%c0_75, %c0_76], %228 {strides = array<i32>} : memref<8x128xf32, #tpu.memory_space<vmem>>, vector<8x128xf32>,
    %cst_77 = arith.constant 1.000000e+00 : f32
    %230 = vector.broadcast %cst_77 : f32 to vector<8x128xf32>
    %231 = arith.subf %230, %228 : vector<8x128xf32>
    %232 = arith.mulf %231, %0 : vector<8x128xf32>
    %c0_78 = arith.constant 0 : index
    %c0_79 = arith.constant 0 : index
    %233 = vector.load %arg7[%c0_78, %c0_79] : memref<8x128xf32, #tpu.memory_space<vmem>>, vector<8x128xf32>
    tpu.vector_store %arg7[%c0_78, %c0_79], %232 {strides = array<i32>} : memref<8x128xf32, #tpu.memory_space<vmem>>, vector<8x128xf32>,
    %c0_80 = arith.constant 0 : index
    %c0_81 = arith.constant 0 : index
    %234 = vector.load %arg4[%c0_80, %c0_81] : memref<8x128xi32, #tpu.memory_space<vmem>>, vector<8x128xi32>
    %cst_82 = arith.constant 0.000000e+00 : f32
    %235 = vector.broadcast %cst_82 : f32 to vector<8x128xf32>
    %c5 = arith.constant 5 : index
    %c0_83 = arith.constant 0 : index
    %c0_84 = arith.constant 0 : index
    %236 = vector.load %arg1[%c5, %c0_83, %c0_84] : memref<9x8x128xf32, #tpu.memory_space<vmem>>, vector<1x8x128xf32>
    %237 = vector.shape_cast %236 : vector<1x8x128xf32> to vector<8x128xf32>
    %c0_i32 = arith.constant 0 : i32
    %238 = vector.broadcast %c0_i32 : i32 to vector<8x128xi32>
    %239 = arith.cmpi eq, %234, %238 : vector<8x128xi32>
    %cst_85 = arith.constant 1.000000e+00 : f32
    %cst_86 = arith.constant 0.000000e+00 : f32
    %240 = vector.broadcast %cst_85 : f32 to vector<8x128xf32>
    %241 = vector.broadcast %cst_86 : f32 to vector<8x128xf32>
    %242 = arith.select %239, %240, %241 : vector<8x128xi1>, vector<8x128xf32>
    %243 = math.absf %237 : vector<8x128xf32>
    %cst_87 = arith.constant 0.000000e+00 : f32
    %244 = vector.broadcast %cst_87 : f32 to vector<8x128xf32>
    %245 = arith.subf %244, %243 : vector<8x128xf32>
    %246 = math.exp %245 : vector<8x128xf32>
    %cst_88 = arith.constant 1.000000e+00 : f32
    %247 = vector.broadcast %cst_88 : f32 to vector<8x128xf32>
    %248 = arith.addf %247, %246 : vector<8x128xf32>
    %249 = math.log %248 : vector<8x128xf32>
    %cst_89 = arith.constant 1.000000e+00 : f32
    %250 = vector.broadcast %cst_89 : f32 to vector<8x128xf32>
    %251 = arith.mulf %250, %242 : vector<8x128xf32>
    %cst_90 = arith.constant 0.000000e+00 : f32
    %252 = vector.broadcast %cst_90 : f32 to vector<8x128xf32>
    %253 = arith.subf %252, %237 : vector<8x128xf32>
    %cst_91 = arith.constant 0.000000e+00 : f32
    %254 = vector.broadcast %cst_91 : f32 to vector<8x128xf32>
    %255 = arith.maximumf %253, %254 : vector<8x128xf32>
    %256 = arith.addf %255, %249 : vector<8x128xf32>
    %257 = arith.mulf %251, %256 : vector<8x128xf32>
    %cst_92 = arith.constant 1.000000e+00 : f32
    %258 = vector.broadcast %cst_92 : f32 to vector<8x128xf32>
    %259 = arith.subf %258, %242 : vector<8x128xf32>
    %cst_93 = arith.constant 0.000000e+00 : f32
    %260 = vector.broadcast %cst_93 : f32 to vector<8x128xf32>
    %261 = arith.maximumf %237, %260 : vector<8x128xf32>
    %262 = arith.addf %261, %249 : vector<8x128xf32>
    %263 = arith.mulf %259, %262 : vector<8x128xf32>
    %264 = arith.addf %257, %263 : vector<8x128xf32>
    %265 = arith.addf %235, %264 : vector<8x128xf32>
    %c6 = arith.constant 6 : index
    %c0_94 = arith.constant 0 : index
    %c0_95 = arith.constant 0 : index
    %266 = vector.load %arg1[%c6, %c0_94, %c0_95] : memref<9x8x128xf32, #tpu.memory_space<vmem>>, vector<1x8x128xf32>
    %267 = vector.shape_cast %266 : vector<1x8x128xf32> to vector<8x128xf32>
    %c1_i32 = arith.constant 1 : i32
    %268 = vector.broadcast %c1_i32 : i32 to vector<8x128xi32>
    %269 = arith.cmpi eq, %234, %268 : vector<8x128xi32>
    %cst_96 = arith.constant 1.000000e+00 : f32
    %cst_97 = arith.constant 0.000000e+00 : f32
    %270 = vector.broadcast %cst_96 : f32 to vector<8x128xf32>
    %271 = vector.broadcast %cst_97 : f32 to vector<8x128xf32>
    %272 = arith.select %269, %270, %271 : vector<8x128xi1>, vector<8x128xf32>
    %273 = math.absf %267 : vector<8x128xf32>
    %cst_98 = arith.constant 0.000000e+00 : f32
    %274 = vector.broadcast %cst_98 : f32 to vector<8x128xf32>
    %275 = arith.subf %274, %273 : vector<8x128xf32>
    %276 = math.exp %275 : vector<8x128xf32>
    %cst_99 = arith.constant 1.000000e+00 : f32
    %277 = vector.broadcast %cst_99 : f32 to vector<8x128xf32>
    %278 = arith.addf %277, %276 : vector<8x128xf32>
    %279 = math.log %278 : vector<8x128xf32>
    %cst_100 = arith.constant 1.000000e+00 : f32
    %280 = vector.broadcast %cst_100 : f32 to vector<8x128xf32>
    %281 = arith.mulf %280, %272 : vector<8x128xf32>
    %cst_101 = arith.constant 0.000000e+00 : f32
    %282 = vector.broadcast %cst_101 : f32 to vector<8x128xf32>
    %283 = arith.subf %282, %267 : vector<8x128xf32>
    %cst_102 = arith.constant 0.000000e+00 : f32
    %284 = vector.broadcast %cst_102 : f32 to vector<8x128xf32>
    %285 = arith.maximumf %283, %284 : vector<8x128xf32>
    %286 = arith.addf %285, %279 : vector<8x128xf32>
    %287 = arith.mulf %281, %286 : vector<8x128xf32>
    %cst_103 = arith.constant 1.000000e+00 : f32
    %288 = vector.broadcast %cst_103 : f32 to vector<8x128xf32>
    %289 = arith.subf %288, %272 : vector<8x128xf32>
    %cst_104 = arith.constant 0.000000e+00 : f32
    %290 = vector.broadcast %cst_104 : f32 to vector<8x128xf32>
    %291 = arith.maximumf %267, %290 : vector<8x128xf32>
    %292 = arith.addf %291, %279 : vector<8x128xf32>
    %293 = arith.mulf %289, %292 : vector<8x128xf32>
    %294 = arith.addf %287, %293 : vector<8x128xf32>
    %295 = arith.addf %265, %294 : vector<8x128xf32>
    %c7 = arith.constant 7 : index
    %c0_105 = arith.constant 0 : index
    %c0_106 = arith.constant 0 : index
    %296 = vector.load %arg1[%c7, %c0_105, %c0_106] : memref<9x8x128xf32, #tpu.memory_space<vmem>>, vector<1x8x128xf32>
    %297 = vector.shape_cast %296 : vector<1x8x128xf32> to vector<8x128xf32>
    %c2_i32 = arith.constant 2 : i32
    %298 = vector.broadcast %c2_i32 : i32 to vector<8x128xi32>
    %299 = arith.cmpi eq, %234, %298 : vector<8x128xi32>
    %cst_107 = arith.constant 1.000000e+00 : f32
    %cst_108 = arith.constant 0.000000e+00 : f32
    %300 = vector.broadcast %cst_107 : f32 to vector<8x128xf32>
    %301 = vector.broadcast %cst_108 : f32 to vector<8x128xf32>
    %302 = arith.select %299, %300, %301 : vector<8x128xi1>, vector<8x128xf32>
    %303 = math.absf %297 : vector<8x128xf32>
    %cst_109 = arith.constant 0.000000e+00 : f32
    %304 = vector.broadcast %cst_109 : f32 to vector<8x128xf32>
    %305 = arith.subf %304, %303 : vector<8x128xf32>
    %306 = math.exp %305 : vector<8x128xf32>
    %cst_110 = arith.constant 1.000000e+00 : f32
    %307 = vector.broadcast %cst_110 : f32 to vector<8x128xf32>
    %308 = arith.addf %307, %306 : vector<8x128xf32>
    %309 = math.log %308 : vector<8x128xf32>
    %cst_111 = arith.constant 1.000000e+00 : f32
    %310 = vector.broadcast %cst_111 : f32 to vector<8x128xf32>
    %311 = arith.mulf %310, %302 : vector<8x128xf32>
    %cst_112 = arith.constant 0.000000e+00 : f32
    %312 = vector.broadcast %cst_112 : f32 to vector<8x128xf32>
    %313 = arith.subf %312, %297 : vector<8x128xf32>
    %cst_113 = arith.constant 0.000000e+00 : f32
    %314 = vector.broadcast %cst_113 : f32 to vector<8x128xf32>
    %315 = arith.maximumf %313, %314 : vector<8x128xf32>
    %316 = arith.addf %315, %309 : vector<8x128xf32>
    %317 = arith.mulf %311, %316 : vector<8x128xf32>
    %cst_114 = arith.constant 1.000000e+00 : f32
    %318 = vector.broadcast %cst_114 : f32 to vector<8x128xf32>
    %319 = arith.subf %318, %302 : vector<8x128xf32>
    %cst_115 = arith.constant 0.000000e+00 : f32
    %320 = vector.broadcast %cst_115 : f32 to vector<8x128xf32>
    %321 = arith.maximumf %297, %320 : vector<8x128xf32>
    %322 = arith.addf %321, %309 : vector<8x128xf32>
    %323 = arith.mulf %319, %322 : vector<8x128xf32>
    %324 = arith.addf %317, %323 : vector<8x128xf32>
    %325 = arith.addf %295, %324 : vector<8x128xf32>
    %c8 = arith.constant 8 : index
    %c0_116 = arith.constant 0 : index
    %c0_117 = arith.constant 0 : index
    %326 = vector.load %arg1[%c8, %c0_116, %c0_117] : memref<9x8x128xf32, #tpu.memory_space<vmem>>, vector<1x8x128xf32>
    %327 = vector.shape_cast %326 : vector<1x8x128xf32> to vector<8x128xf32>
    %c3_i32 = arith.constant 3 : i32
    %328 = vector.broadcast %c3_i32 : i32 to vector<8x128xi32>
    %329 = arith.cmpi eq, %234, %328 : vector<8x128xi32>
    %cst_118 = arith.constant 1.000000e+00 : f32
    %cst_119 = arith.constant 0.000000e+00 : f32
    %330 = vector.broadcast %cst_118 : f32 to vector<8x128xf32>
    %331 = vector.broadcast %cst_119 : f32 to vector<8x128xf32>
    %332 = arith.select %329, %330, %331 : vector<8x128xi1>, vector<8x128xf32>
    %333 = math.absf %327 : vector<8x128xf32>
    %cst_120 = arith.constant 0.000000e+00 : f32
    %334 = vector.broadcast %cst_120 : f32 to vector<8x128xf32>
    %335 = arith.subf %334, %333 : vector<8x128xf32>
    %336 = math.exp %335 : vector<8x128xf32>
    %cst_121 = arith.constant 1.000000e+00 : f32
    %337 = vector.broadcast %cst_121 : f32 to vector<8x128xf32>
    %338 = arith.addf %337, %336 : vector<8x128xf32>
    %339 = math.log %338 : vector<8x128xf32>
    %cst_122 = arith.constant 1.000000e+00 : f32
    %340 = vector.broadcast %cst_122 : f32 to vector<8x128xf32>
    %341 = arith.mulf %340, %332 : vector<8x128xf32>
    %cst_123 = arith.constant 0.000000e+00 : f32
    %342 = vector.broadcast %cst_123 : f32 to vector<8x128xf32>
    %343 = arith.subf %342, %327 : vector<8x128xf32>
    %cst_124 = arith.constant 0.000000e+00 : f32
    %344 = vector.broadcast %cst_124 : f32 to vector<8x128xf32>
    %345 = arith.maximumf %343, %344 : vector<8x128xf32>
    %346 = arith.addf %345, %339 : vector<8x128xf32>
    %347 = arith.mulf %341, %346 : vector<8x128xf32>
    %cst_125 = arith.constant 1.000000e+00 : f32
    %348 = vector.broadcast %cst_125 : f32 to vector<8x128xf32>
    %349 = arith.subf %348, %332 : vector<8x128xf32>
    %cst_126 = arith.constant 0.000000e+00 : f32
    %350 = vector.broadcast %cst_126 : f32 to vector<8x128xf32>
    %351 = arith.maximumf %327, %350 : vector<8x128xf32>
    %352 = arith.addf %351, %339 : vector<8x128xf32>
    %353 = arith.mulf %349, %352 : vector<8x128xf32>
    %354 = arith.addf %347, %353 : vector<8x128xf32>
    %355 = arith.addf %325, %354 : vector<8x128xf32>
    %356 = arith.mulf %355, %0 : vector<8x128xf32>
    %c0_127 = arith.constant 0 : index
    %c0_128 = arith.constant 0 : index
    %357 = vector.load %arg8[%c0_127, %c0_128] : memref<8x128xf32, #tpu.memory_space<vmem>>, vector<8x128xf32>
    tpu.vector_store %arg8[%c0_127, %c0_128], %356 {strides = array<i32>} : memref<8x128xf32, #tpu.memory_space<vmem>>, vector<8x128xf32>,
    return
  }
  func.func @transform_0(%arg0: i32) -> (i32, i32, i32) {
    %c0_i32 = arith.constant 0 : i32
    %c0_i32_0 = arith.constant 0 : i32
    %c0_i32_1 = arith.constant 0 : i32
    return %c0_i32, %arg0, %c0_i32_0 : i32, i32, i32
  }
  func.func @transform_1(%arg0: i32) -> (i32, i32, i32) {
    %c0_i32 = arith.constant 0 : i32
    %c0_i32_0 = arith.constant 0 : i32
    %c0_i32_1 = arith.constant 0 : i32
    return %c0_i32, %arg0, %c0_i32_0 : i32, i32, i32
  }
  func.func @transform_2(%arg0: i32) -> (i32, i32, i32) {
    %c0_i32 = arith.constant 0 : i32
    %c0_i32_0 = arith.constant 0 : i32
    %c0_i32_1 = arith.constant 0 : i32
    return %c0_i32, %arg0, %c0_i32_0 : i32, i32, i32
  }
  func.func @transform_3(%arg0: i32) -> (i32, i32) {
    %c0_i32 = arith.constant 0 : i32
    %c0_i32_0 = arith.constant 0 : i32
    return %arg0, %c0_i32 : i32, i32
  }
  func.func @transform_4(%arg0: i32) -> (i32, i32) {
    %c0_i32 = arith.constant 0 : i32
    %c0_i32_0 = arith.constant 0 : i32
    return %arg0, %c0_i32 : i32, i32
  }
  func.func @transform_5(%arg0: i32) -> (i32, i32) {
    %c0_i32 = arith.constant 0 : i32
    %c0_i32_0 = arith.constant 0 : i32
    return %arg0, %c0_i32 : i32, i32
  }
  func.func @transform_6(%arg0: i32) -> (i32, i32) {
    %c0_i32 = arith.constant 0 : i32
    %c0_i32_0 = arith.constant 0 : i32
    return %arg0, %c0_i32 : i32, i32
  }
  func.func @transform_7(%arg0: i32) -> (i32, i32) {
    %c0_i32 = arith.constant 0 : i32
    %c0_i32_0 = arith.constant 0 : i32
    return %arg0, %c0_i32 : i32, i32
  }
}

</mosaic_0001>

<llo_original>
// kernel: tpu_custom_call.1
$region0: #{tpu_custom_call.1}
  #allocation0 [shape = 'u32[]', space=smem, size = 0x4, offset = 0x4, fixed_abs, tag = 'smem constant byte address 0x4 - core index']
  #allocation1 [shape = 'u32[144,128]{1,0:T(1,128)}', space=vmem, size = 0x12000, scoped, tag = 'internal scratch']
  %s0 = inlined_call_operand.hbm [shape: f32[9,24,128], index: 0, kind: input, shape index: {}]
  %s1 = inlined_call_operand.hbm [shape: f32[4,24,128], index: 1, kind: input, shape index: {}]
  %s2 = inlined_call_operand.hbm [shape: f32[2,24,128], index: 2, kind: input, shape index: {}]
  %s3 = inlined_call_operand.hbm [shape: s32[24,128], index: 3, kind: input, shape index: {}]
  %s4 = inlined_call_operand.hbm [shape: f32[24,128], index: 4, kind: input, shape index: {}]
  %s5 = inlined_call_operand.hbm [shape: f32[24,128], index: 5, kind: output, shape index: {0}]
  %s6 = inlined_call_operand.hbm [shape: f32[24,128], index: 6, kind: output, shape index: {1}]
  %s7 = inlined_call_operand.hbm [shape: f32[24,128], index: 7, kind: output, shape index: {2}]
  %8 = xla_tuple %s5, %s6, %s7
  %s9 = sld [smem:[#allocation0]]
  $region89: #{tpu_custom_call.1} parent=0
    _
  %s11 = ssub.s32 1, %s9
  %s12 = scalar_select 0, %s11, %s9
  $region1: #{tpu_custom_call.1} parent=0
    #allocation2 [shape = 'u8[73728]{0}', space=vmem, size = 0x12000, scoped, tag = 'input window, operand 0']
    #allocation3 [shape = 's32[2]{0}', space=sflag, size = 0x8, scoped, tag = 'scoped memory for tpu_custom_call.1']
    #allocation4 [shape = 's32[2]{0}', space=sflag, size = 0x8, scoped, tag = 'scoped memory for tpu_custom_call.1']
    #allocation5 [shape = 'u8[32768]{0}', space=vmem, size = 0x8000, scoped, tag = 'input window, operand 1']
    #allocation6 [shape = 's32[2]{0}', space=sflag, size = 0x8, scoped, tag = 'scoped memory for tpu_custom_call.1']
    #allocation7 [shape = 'u8[16384]{0}', space=vmem, size = 0x4000, scoped, tag = 'input window, operand 2']
    #allocation8 [shape = 'u8[8192]{0}', space=vmem, size = 0x2000, scoped, tag = 'input window, operand 3']
    #allocation9 [shape = 's32[2]{0}', space=sflag, size = 0x8, scoped, tag = 'scoped memory for tpu_custom_call.1']
    #allocation10 [shape = 'u8[8192]{0}', space=vmem, size = 0x2000, scoped, tag = 'input window, operand 4']
    #allocation11 [shape = 'u8[8192]{0}', space=vmem, size = 0x2000, scoped, tag = 'output window, operand 0']
    #allocation12 [shape = 'u8[8192]{0}', space=vmem, size = 0x2000, scoped, tag = 'output window, operand 1']
    #allocation13 [shape = 's32[2]{0}', space=sflag, size = 0x8, scoped, tag = 'scoped memory for tpu_custom_call.1']
    #allocation14 [shape = 'u8[8192]{0}', space=vmem, size = 0x2000, scoped, tag = 'output window, operand 2']
    %13 = vsyncpa [#allocation3], 0
    %s14 = scalar_lea.sflag [#allocation3], 1
    %15 = vsyncpa %s14, 0
    %16 = vsyncpa [#allocation6], 0
    %s17 = scalar_lea.sflag [#allocation6], 1
    %18 = vsyncpa %s17, 0
    %19 = vsyncpa [#allocation9], 0
    %s20 = scalar_lea.sflag [#allocation9], 1
    %21 = vsyncpa %s20, 0
    %22 = vsyncpa [#allocation4], 0
    %s23 = scalar_lea.sflag [#allocation4], 1
    %24 = vsyncpa %s23, 0
    %25 = vsyncpa [#allocation13], 0
    %s26 = scalar_lea.sflag [#allocation13], 1
    %27 = vsyncpa %s26, 0
    loop: start=0, step=1, limit=5
    $region2: #{tpu_custom_call.1} parent=1 // loop_pre_header
      _
    $region3: #{tpu_custom_call.1} parent=1 // loop_header
      %s29 = sphi 0, %s33
      %p30 = scmp.ge.s32.totalorder %s29, 5
      %s39 = sphi 0, %s41
      %s42 = sphi 0, %s39
      %s43 = sphi 0, %s42
      %s59 = sphi 0, %s43
      %s65 = sphi 0, %s67
      %s68 = sphi 0, %s65
      %s69 = sphi 0, %s68
      %s85 = sphi 0, %s69
      %s91 = sphi 0, %s93
      %s94 = sphi 0, %s91
      %s95 = sphi 0, %s94
      %s111 = sphi 0, %s95
      %s117 = sphi 0, %s119
      %s120 = sphi 0, %s117
      %s121 = sphi 0, %s120
      %s137 = sphi 0, %s121
      %s143 = sphi 0, %s145
      %s146 = sphi 0, %s143
      %s147 = sphi 0, %s146
      %s163 = sphi 0, %s147
      %s169 = sphi 0, %s171
      %s172 = sphi 0, %s169
      %s173 = sphi 0, %s172
      %s189 = sphi 0, %s173
      %s195 = sphi 0, %s197
      %s198 = sphi 0, %s195
      %s199 = sphi 0, %s198
      %s215 = sphi 0, %s199
      %s221 = sphi 0, %s223
      %s224 = sphi 0, %s221
      %s225 = sphi 0, %s224
      %s241 = sphi 0, %s225
    $region4: #{tpu_custom_call.1} parent=1 // loop_header_branch
      %32 = sbr.rel (%p30) target = $region8
    $region5: #{tpu_custom_call.1} parent=1 // loop_body
      %s34 = ssub.s32 %s29, 1
      %s35 = ssub.s32 %s29, 2
      %s36 = sadd.s32 %s29, 1
      %s37 = ssub.s32 %s29, %s36
      %p38 = scmp.eq.s32.totalorder %s37, 0
      %s40 = sadd.s32 %s39, 1
      %s41 = scalar_select %p38, %s39, %s40
      %p44 = pneg %p38
      %p45 = scmp.eq.s32.totalorder %s29, 2
      %p46 = por %p44, %p45
      %p47 = scmp.ne.s32.totalorder %s39, %s42
      %p48 = scmp.eq.s32.totalorder %s29, 0
      %p49 = por %p47, %p48
      %p50 = scmp.ne.s32.totalorder %s39, %s42
      %p51 = scmp.eq.s32.totalorder %s34, 2
      %p52 = por %p50, %p51
      %p53 = scmp.ne.s32.totalorder %s42, %s43
      %p54 = scmp.eq.s32.totalorder %s34, 0
      %p55 = por %p53, %p54
      %p56 = scmp.ne.s32.totalorder %s42, %s43
      %p57 = scmp.eq.s32.totalorder %s35, 2
      %p58 = por %p56, %p57
      %p60 = scmp.ne.s32.totalorder %s43, %s59
      %p61 = scmp.eq.s32.totalorder %s35, 0
      %p62 = por %p60, %p61
      %s63 = ssub.s32 %s29, %s36
      %p64 = scmp.eq.s32.totalorder %s63, 0
      %s66 = sadd.s32 %s65, 1
      %s67 = scalar_select %p64, %s65, %s66
      %p70 = pneg %p64
      %p71 = scmp.eq.s32.totalorder %s29, 2
      %p72 = por %p70, %p71
      %p73 = scmp.ne.s32.totalorder %s65, %s68
      %p74 = scmp.eq.s32.totalorder %s29, 0
      %p75 = por %p73, %p74
      %p76 = scmp.ne.s32.totalorder %s65, %s68
      %p77 = scmp.eq.s32.totalorder %s34, 2
      %p78 = por %p76, %p77
      %p79 = scmp.ne.s32.totalorder %s68, %s69
      %p80 = scmp.eq.s32.totalorder %s34, 0
      %p81 = por %p79, %p80
      %p82 = scmp.ne.s32.totalorder %s68, %s69
      %p83 = scmp.eq.s32.totalorder %s35, 2
      %p84 = por %p82, %p83
      %p86 = scmp.ne.s32.totalorder %s69, %s85
      %p87 = scmp.eq.s32.totalorder %s35, 0
      %p88 = por %p86, %p87
      %s89 = ssub.s32 %s29, %s36
      %p90 = scmp.eq.s32.totalorder %s89, 0
      %s92 = sadd.s32 %s91, 1
      %s93 = scalar_select %p90, %s91, %s92
      %p96 = pneg %p90
      %p97 = scmp.eq.s32.totalorder %s29, 2
      %p98 = por %p96, %p97
      %p99 = scmp.ne.s32.totalorder %s91, %s94
      %p100 = scmp.eq.s32.totalorder %s29, 0
      %p101 = por %p99, %p100
      %p102 = scmp.ne.s32.totalorder %s91, %s94
      %p103 = scmp.eq.s32.totalorder %s34, 2
      %p104 = por %p102, %p103
      %p105 = scmp.ne.s32.totalorder %s94, %s95
      %p106 = scmp.eq.s32.totalorder %s34, 0
      %p107 = por %p105, %p106
      %p108 = scmp.ne.s32.totalorder %s94, %s95
      %p109 = scmp.eq.s32.totalorder %s35, 2
      %p110 = por %p108, %p109
      %p112 = scmp.ne.s32.totalorder %s95, %s111
      %p113 = scmp.eq.s32.totalorder %s35, 0
      %p114 = por %p112, %p113
      %s115 = ssub.s32 %s29, %s36
      %p116 = scmp.eq.s32.totalorder %s115, 0
      %s118 = sadd.s32 %s117, 1
      %s119 = scalar_select %p116, %s117, %s118
      %p122 = pneg %p116
      %p123 = scmp.eq.s32.totalorder %s29, 2
      %p124 = por %p122, %p123
      %p125 = scmp.ne.s32.totalorder %s117, %s120
      %p126 = scmp.eq.s32.totalorder %s29, 0
      %p127 = por %p125, %p126
      %p128 = scmp.ne.s32.totalorder %s117, %s120
      %p129 = scmp.eq.s32.totalorder %s34, 2
      %p130 = por %p128, %p129
      %p131 = scmp.ne.s32.totalorder %s120, %s121
      %p132 = scmp.eq.s32.totalorder %s34, 0
      %p133 = por %p131, %p132
      %p134 = scmp.ne.s32.totalorder %s120, %s121
      %p135 = scmp.eq.s32.totalorder %s35, 2
      %p136 = por %p134, %p135
      %p138 = scmp.ne.s32.totalorder %s121, %s137
      %p139 = scmp.eq.s32.totalorder %s35, 0
      %p140 = por %p138, %p139
      %s141 = ssub.s32 %s29, %s36
      %p142 = scmp.eq.s32.totalorder %s141, 0
      %s144 = sadd.s32 %s143, 1
      %s145 = scalar_select %p142, %s143, %s144
      %p148 = pneg %p142
      %p149 = scmp.eq.s32.totalorder %s29, 2
      %p150 = por %p148, %p149
      %p151 = scmp.ne.s32.totalorder %s143, %s146
      %p152 = scmp.eq.s32.totalorder %s29, 0
      %p153 = por %p151, %p152
      %p154 = scmp.ne.s32.totalorder %s143, %s146
      %p155 = scmp.eq.s32.totalorder %s34, 2
      %p156 = por %p154, %p155
      %p157 = scmp.ne.s32.totalorder %s146, %s147
      %p158 = scmp.eq.s32.totalorder %s34, 0
      %p159 = por %p157, %p158
      %p160 = scmp.ne.s32.totalorder %s146, %s147
      %p161 = scmp.eq.s32.totalorder %s35, 2
      %p162 = por %p160, %p161
      %p164 = scmp.ne.s32.totalorder %s147, %s163
      %p165 = scmp.eq.s32.totalorder %s35, 0
      %p166 = por %p164, %p165
      %s167 = ssub.s32 %s29, %s36
      %p168 = scmp.eq.s32.totalorder %s167, 0
      %s170 = sadd.s32 %s169, 1
      %s171 = scalar_select %p168, %s169, %s170
      %p174 = pneg %p168
      %p175 = scmp.eq.s32.totalorder %s29, 2
      %p176 = por %p174, %p175
      %p177 = scmp.ne.s32.totalorder %s169, %s172
      %p178 = scmp.eq.s32.totalorder %s29, 0
      %p179 = por %p177, %p178
      %p180 = scmp.ne.s32.totalorder %s169, %s172
      %p181 = scmp.eq.s32.totalorder %s34, 2
      %p182 = por %p180, %p181
      %p183 = scmp.ne.s32.totalorder %s172, %s173
      %p184 = scmp.eq.s32.totalorder %s34, 0
      %p185 = por %p183, %p184
      %p186 = scmp.ne.s32.totalorder %s172, %s173
      %p187 = scmp.eq.s32.totalorder %s35, 2
      %p188 = por %p186, %p187
      %p190 = scmp.ne.s32.totalorder %s173, %s189
      %p191 = scmp.eq.s32.totalorder %s35, 0
      %p192 = por %p190, %p191
      %s193 = ssub.s32 %s29, %s36
      %p194 = scmp.eq.s32.totalorder %s193, 0
      %s196 = sadd.s32 %s195, 1
      %s197 = scalar_select %p194, %s195, %s196
      %p200 = pneg %p194
      %p201 = scmp.eq.s32.totalorder %s29, 2
      %p202 = por %p200, %p201
      %p203 = scmp.ne.s32.totalorder %s195, %s198
      %p204 = scmp.eq.s32.totalorder %s29, 0
      %p205 = por %p203, %p204
      %p206 = scmp.ne.s32.totalorder %s195, %s198
      %p207 = scmp.eq.s32.totalorder %s34, 2
      %p208 = por %p206, %p207
      %p209 = scmp.ne.s32.totalorder %s198, %s199
      %p210 = scmp.eq.s32.totalorder %s34, 0
      %p211 = por %p209, %p210
      %p212 = scmp.ne.s32.totalorder %s198, %s199
      %p213 = scmp.eq.s32.totalorder %s35, 2
      %p214 = por %p212, %p213
      %p216 = scmp.ne.s32.totalorder %s199, %s215
      %p217 = scmp.eq.s32.totalorder %s35, 0
      %p218 = por %p216, %p217
      %s219 = ssub.s32 %s29, %s36
      %p220 = scmp.eq.s32.totalorder %s219, 0
      %s222 = sadd.s32 %s221, 1
      %s223 = scalar_select %p220, %s221, %s222
      %p226 = pneg %p220
      %p227 = scmp.eq.s32.totalorder %s29, 2
      %p228 = por %p226, %p227
      %p229 = scmp.ne.s32.totalorder %s221, %s224
      %p230 = scmp.eq.s32.totalorder %s29, 0
      %p231 = por %p229, %p230
      %p232 = scmp.ne.s32.totalorder %s221, %s224
      %p233 = scmp.eq.s32.totalorder %s34, 2
      %p234 = por %p232, %p233
      %p235 = scmp.ne.s32.totalorder %s224, %s225
      %p236 = scmp.eq.s32.totalorder %s34, 0
      %p237 = por %p235, %p236
      %p238 = scmp.ne.s32.totalorder %s224, %s225
      %p239 = scmp.eq.s32.totalorder %s35, 2
      %p240 = por %p238, %p239
      %p242 = scmp.ne.s32.totalorder %s225, %s241
      %p243 = scmp.eq.s32.totalorder %s35, 0
      %p244 = por %p242, %p243
      %p245 = scmp.le.s32.totalorder 1, %s29
      %p246 = scmp.lt.s32.totalorder %s29, 4
      %p247 = pnand %p245, %p246
      %p248 = pneg %p247
      // Predicated region
      $region9: #{tpu_custom_call.1} parent=5 // pred_check
        _
      $region10: #{tpu_custom_call.1} parent=5 // pred_check_branch
        %250 = sbr.rel (%p247) target = $region12
      $region11: #{tpu_custom_call.1} parent=5 // pred_region
        %s251 = ssub.s32 %s29, 1
      $region12: #{tpu_custom_call.1} parent=5 // pred_fallthru
        _
      %p252 = scmp.lt.s32.totalorder %s29, 3
      // Predicated region
      $region13: #{tpu_custom_call.1} parent=5 // pred_check
        %p253 = pneg %p252
      $region14: #{tpu_custom_call.1} parent=5 // pred_check_branch
        %255 = sbr.rel (%p253) target = $region16
      $region15: #{tpu_custom_call.1} parent=5 // pred_region
        // Predicated region
        $region17: #{tpu_custom_call.1} parent=15 // pred_check
          %p256 = pneg %p49
        $region18: #{tpu_custom_call.1} parent=15 // pred_check_branch
          %258 = sbr.rel (%p256) target = $region20
        $region19: #{tpu_custom_call.1} parent=15 // pred_region
          %s259 = sand.u32 %s39, 1
          %s260 = scalar_lea.sflag [#allocation3], %s259
          %s261 = sand.u32 %s39, 1
          %s262 = smul.addr %s261, 72
          %s263 = scalar_lea.vmem [#allocation2], %s262
          %s265 = ssub.s32 1152, 1152
          %266 = vsyncadd %s260, %s265
          %s267 = smul.addr %s29, 128
          %s268 = scalar_lea.hbm %s0, %s267
          %s269 = sshll.u32 %s263, 4
          %s270 = int_to_ptr.vmem [resolvable:$true] %s269
          %275 = dma.hbm_to_vmem [thread:$0]  %s268, 1152, %s270, %s260, 384, 128, 8
        $region20: #{tpu_custom_call.1} parent=15 // pred_fallthru
          _
        // Predicated region
        $region21: #{tpu_custom_call.1} parent=15 // pred_check
          %p276 = pneg %p75
        $region22: #{tpu_custom_call.1} parent=15 // pred_check_branch
          %278 = sbr.rel (%p276) target = $region24
        $region23: #{tpu_custom_call.1} parent=15 // pred_region
          %s279 = sand.u32 %s29, 1
          %s280 = scalar_lea.sflag [#allocation6], %s279
          %s281 = sand.u32 %s65, 1
          %s282 = smul.addr %s281, 32
          %s283 = scalar_lea.vmem [#allocation5], %s282
          %s285 = ssub.s32 512, 512
          %286 = vsyncadd %s280, %s285
          %s287 = smul.addr %s29, 128
          %s288 = scalar_lea.hbm %s1, %s287
          %s289 = sshll.u32 %s283, 4
          %s290 = int_to_ptr.vmem [resolvable:$true] %s289
          %295 = dma.hbm_to_vmem [thread:$0]  %s288, 512, %s290, %s280, 384, 128, 8
        $region24: #{tpu_custom_call.1} parent=15 // pred_fallthru
          _
        // Predicated region
        $region25: #{tpu_custom_call.1} parent=15 // pred_check
          %p296 = pneg %p101
        $region26: #{tpu_custom_call.1} parent=15 // pred_check_branch
          %298 = sbr.rel (%p296) target = $region28
        $region27: #{tpu_custom_call.1} parent=15 // pred_region
          %s299 = sand.u32 %s29, 1
          %s300 = scalar_lea.sflag [#allocation6], %s299
          %s301 = sand.u32 %s91, 1
          %s302 = smul.addr %s301, 16
          %s303 = scalar_lea.vmem [#allocation7], %s302
          %s305 = ssub.s32 256, 256
          %306 = vsyncadd %s300, %s305
          %s307 = smul.addr %s29, 128
          %s308 = scalar_lea.hbm %s2, %s307
          %s309 = sshll.u32 %s303, 4
          %s310 = int_to_ptr.vmem [resolvable:$true] %s309
          %315 = dma.hbm_to_vmem [thread:$0]  %s308, 256, %s310, %s300, 384, 128, 8
        $region28: #{tpu_custom_call.1} parent=15 // pred_fallthru
          _
        // Predicated region
        $region29: #{tpu_custom_call.1} parent=15 // pred_check
          %p316 = pneg %p127
        $region30: #{tpu_custom_call.1} parent=15 // pred_check_branch
          %318 = sbr.rel (%p316) target = $region32
        $region31: #{tpu_custom_call.1} parent=15 // pred_region
          %s319 = sand.u32 %s29, 1
          %s320 = scalar_lea.sflag [#allocation9], %s319
          %s321 = sand.u32 %s117, 1
          %s322 = smul.addr %s321, 8
          %s323 = scalar_lea.vmem [#allocation8], %s322
          %s325 = ssub.s32 128, 128
          %326 = vsyncadd %s320, %s325
          %s327 = smul.addr %s29, 128
          %s328 = scalar_lea.hbm %s3, %s327
          %s330 = sshll.u32 %s323, 4
          %s331 = int_to_ptr.vmem [resolvable:$true] %s330
          %333 = dma.hbm_to_vmem [thread:$0]  %s328, 128, %s331, %s320
        $region32: #{tpu_custom_call.1} parent=15 // pred_fallthru
          _
        // Predicated region
        $region33: #{tpu_custom_call.1} parent=15 // pred_check
          %p334 = pneg %p153
        $region34: #{tpu_custom_call.1} parent=15 // pred_check_branch
          %336 = sbr.rel (%p334) target = $region36
        $region35: #{tpu_custom_call.1} parent=15 // pred_region
          %s337 = sand.u32 %s29, 1
          %s338 = scalar_lea.sflag [#allocation9], %s337
          %s339 = sand.u32 %s143, 1
          %s340 = smul.addr %s339, 8
          %s341 = scalar_lea.vmem [#allocation10], %s340
          %s343 = ssub.s32 128, 128
          %344 = vsyncadd %s338, %s343
          %s345 = smul.addr %s29, 128
          %s346 = scalar_lea.hbm %s4, %s345
          %s348 = sshll.u32 %s341, 4
          %s349 = int_to_ptr.vmem [resolvable:$true] %s348
          %351 = dma.hbm_to_vmem [thread:$0]  %s346, 128, %s349, %s338
        $region36: #{tpu_custom_call.1} parent=15 // pred_fallthru
          _
      $region16: #{tpu_custom_call.1} parent=5 // pred_fallthru
        _
      %p352 = scmp.le.s32.totalorder 1, %s29
      %p353 = scmp.lt.s32.totalorder %s29, 4
      %p354 = pnand %p352, %p353
      %p355 = pneg %p354
      // Predicated region
      $region37: #{tpu_custom_call.1} parent=5 // pred_check
        _
      $region38: #{tpu_custom_call.1} parent=5 // pred_check_branch
        %357 = sbr.rel (%p354) target = $region40
      $region39: #{tpu_custom_call.1} parent=5 // pred_region
        %s358 = ssub.s32 %s29, 1
        %s359 = sand.u32 %s42, 1
        %s360 = scalar_lea.sflag [#allocation3], %s359
        %s361 = sand.u32 %s42, 1
        %s362 = smul.addr %s361, 72
        %s363 = scalar_lea.vmem [#allocation2], %s362
        // Predicated region
        $region41: #{tpu_custom_call.1} parent=39 // pred_check
          %p364 = pneg %p55
        $region42: #{tpu_custom_call.1} parent=39 // pred_check_branch
          %366 = sbr.rel (%p364) target = $region44
        $region43: #{tpu_custom_call.1} parent=39 // pred_region
          %367 = dma.done %s360, 1152
        $region44: #{tpu_custom_call.1} parent=39 // pred_fallthru
          _
        %s368 = sand.u32 %s34, 1
        %s369 = scalar_lea.sflag [#allocation6], %s368
        %s370 = sand.u32 %s68, 1
        %s371 = smul.addr %s370, 32
        %s372 = scalar_lea.vmem [#allocation5], %s371
        // Predicated region
        $region45: #{tpu_custom_call.1} parent=39 // pred_check
          %p373 = pneg %p81
        $region46: #{tpu_custom_call.1} parent=39 // pred_check_branch
          %375 = sbr.rel (%p373) target = $region48
        $region47: #{tpu_custom_call.1} parent=39 // pred_region
          %376 = dma.done %s369, 512
        $region48: #{tpu_custom_call.1} parent=39 // pred_fallthru
          _
        %s377 = sand.u32 %s34, 1
        %s378 = scalar_lea.sflag [#allocation6], %s377
        %s379 = sand.u32 %s94, 1
        %s380 = smul.addr %s379, 16
        %s381 = scalar_lea.vmem [#allocation7], %s380
        // Predicated region
        $region49: #{tpu_custom_call.1} parent=39 // pred_check
          %p382 = pneg %p107
        $region50: #{tpu_custom_call.1} parent=39 // pred_check_branch
          %384 = sbr.rel (%p382) target = $region52
        $region51: #{tpu_custom_call.1} parent=39 // pred_region
          %385 = dma.done %s378, 256
        $region52: #{tpu_custom_call.1} parent=39 // pred_fallthru
          _
        %s386 = sand.u32 %s34, 1
        %s387 = scalar_lea.sflag [#allocation9], %s386
        %s388 = sand.u32 %s120, 1
        %s389 = smul.addr %s388, 8
        %s390 = scalar_lea.vmem [#allocation8], %s389
        // Predicated region
        $region53: #{tpu_custom_call.1} parent=39 // pred_check
          %p391 = pneg %p133
        $region54: #{tpu_custom_call.1} parent=39 // pred_check_branch
          %393 = sbr.rel (%p391) target = $region56
        $region55: #{tpu_custom_call.1} parent=39 // pred_region
          %394 = dma.done %s387, 128
        $region56: #{tpu_custom_call.1} parent=39 // pred_fallthru
          _
        %s395 = sand.u32 %s34, 1
        %s396 = scalar_lea.sflag [#allocation9], %s395
        %s397 = sand.u32 %s146, 1
        %s398 = smul.addr %s397, 8
        %s399 = scalar_lea.vmem [#allocation10], %s398
        // Predicated region
        $region57: #{tpu_custom_call.1} parent=39 // pred_check
          %p400 = pneg %p159
        $region58: #{tpu_custom_call.1} parent=39 // pred_check_branch
          %402 = sbr.rel (%p400) target = $region60
        $region59: #{tpu_custom_call.1} parent=39 // pred_region
          %403 = dma.done %s396, 128
        $region60: #{tpu_custom_call.1} parent=39 // pred_fallthru
          _
        %s404 = sand.u32 %s42, 1
        %s405 = scalar_lea.sflag [#allocation3], %s404
        %s406 = sand.u32 %s42, 1
        %s407 = smul.addr %s406, 72
        %s408 = scalar_lea.vmem [#allocation2], %s407
        %p409 = pneg %p55
        %p410 = pneg %p52
        %s411 = sand.u32 %s34, 1
        %s412 = scalar_lea.sflag [#allocation6], %s411
        %s413 = sand.u32 %s68, 1
        %s414 = smul.addr %s413, 32
        %s415 = scalar_lea.vmem [#allocation5], %s414
        %p416 = pneg %p81
        %p417 = pneg %p78
        %s418 = sand.u32 %s34, 1
        %s419 = scalar_lea.sflag [#allocation6], %s418
        %s420 = sand.u32 %s94, 1
        %s421 = smul.addr %s420, 16
        %s422 = scalar_lea.vmem [#allocation7], %s421
        %p423 = pneg %p107
        %p424 = pneg %p104
        %s425 = sand.u32 %s34, 1
        %s426 = scalar_lea.sflag [#allocation9], %s425
        %s427 = sand.u32 %s120, 1
        %s428 = smul.addr %s427, 8
        %s429 = scalar_lea.vmem [#allocation8], %s428
        %p430 = pneg %p133
        %p431 = pneg %p130
        %s432 = sand.u32 %s34, 1
        %s433 = scalar_lea.sflag [#allocation9], %s432
        %s434 = sand.u32 %s146, 1
        %s435 = smul.addr %s434, 8
        %s436 = scalar_lea.vmem [#allocation10], %s435
        %p437 = pneg %p159
        %p438 = pneg %p156
        %p439 = pneg %p185
        %p440 = pneg %p182
        %s441 = sand.u32 %s172, 1
        %s442 = scalar_lea.sflag [#allocation4], %s441
        %s443 = sand.u32 %s172, 1
        %s444 = smul.addr %s443, 8
        %s445 = scalar_lea.vmem [#allocation11], %s444
        %p446 = pneg %p211
        %p447 = pneg %p208
        %s448 = sand.u32 %s34, 1
        %s449 = scalar_lea.sflag [#allocation13], %s448
        %s450 = sand.u32 %s198, 1
        %s451 = smul.addr %s450, 8
        %s452 = scalar_lea.vmem [#allocation12], %s451
        %p453 = pneg %p237
        %p454 = pneg %p234
        %s455 = sand.u32 %s34, 1
        %s456 = scalar_lea.sflag [#allocation13], %s455
        %s457 = sand.u32 %s224, 1
        %s458 = smul.addr %s457, 8
        %s459 = scalar_lea.vmem [#allocation14], %s458
        %v460 = vld [vmem:[%s399] sm:$0xff]
        %v461 = vld [vmem:[%s363] sm:$0xff]
        %v462 = vld [vmem:[%s363 + $0x8] sm:$0xff]
        %v463 = vld [vmem:[%s363 + $0x10] sm:$0xff]
        %v464 = vld [vmem:[%s363 + $0x18] sm:$0xff]
        %v465 = vsub.f32 0.0, %v461
        %v466 = vsub.f32 0.0, %v462
        %v467 = vsub.f32 0.0, %v463
        %v468 = vsub.f32 0.0, %v464
        %v469 = vmul.f32 %v465, 1.442695
        %v470 = vpow.pop %v469
        %v471 = vmul.f32 %v466, 1.442695
        %v472 = vpow.pop %v471
        %v473 = vmul.f32 %v467, 1.442695
        %v474 = vpow.pop %v473
        %v475 = vmul.f32 %v468, 1.442695
        %v476 = vpow.pop %v475
        %v477 = vadd.f32 %v470, 1.0
        %v478 = vadd.f32 %v472, 1.0
        %v479 = vadd.f32 %v474, 1.0
        %v480 = vadd.f32 %v476, 1.0
        %v481 = vrcp.pop %v477
        %v482 = vrcp.pop %v478
        %v483 = vrcp.pop %v479
        %v484 = vrcp.pop %v480
        %v485 = vmul.f32 %v481, 2.0
        %v486 = vsub.f32 %v485, 0.5
        %v487 = vmul.f32 %v482, 2.0
        %v488 = vsub.f32 %v487, 0.5
        %v489 = vmul.f32 %v483, 2.0
        %v490 = vmul.f32 %v484, 2.0
        %v491 = vmul.f32 %v489, %v489
        %v492 = vld [vmem:[%s381] sm:$0xff]
        %v493 = vmul.f32 %v491, %v492
        %v494 = vmul.f32 %v490, %v490
        %s495 = scalar_lea.vmem %s381, 8 [#allocation7]
        %v496 = vld [vmem:[%s495] sm:$0xff]
        %v497 = vmul.f32 %v494, %v496
        %v498 = vld [vmem:[%s372] sm:$0xff]
        %s499 = scalar_lea.vmem %s372, 8 [#allocation5]
        %v500 = vld [vmem:[%s499] sm:$0xff]
        %s501 = scalar_lea.vmem %s372, 16 [#allocation5]
        %v502 = vld [vmem:[%s501] sm:$0xff]
        %s503 = scalar_lea.vmem %s372, 24 [#allocation5]
        %v504 = vld [vmem:[%s503] sm:$0xff]
        %v505 = vmul.f32 %v493, 0.5
        %v506 = vsub.f32 %v486, %v505
        %v507 = vadd.f32 %v486, %v505
        %v508 = vmul.f32 %v497, 0.5
        %v509 = vsub.f32 %v488, %v508
        %v510 = vadd.f32 %v488, %v508
        %v511 = vmul.f32 %v502, 0.5
        %v512 = vsub.f32 %v498, %v511
        %v513 = vadd.f32 %v498, %v511
        %v514 = vmul.f32 %v504, 0.5
        %v515 = vsub.f32 %v500, %v514
        %v516 = vadd.f32 %v500, %v514
        %v517 = vmin.f32 %v507, %v513
        %v518 = vmax.f32 %v506, %v512
        %v519 = vsub.f32 %v517, %v518
        %v520 = vmax.f32 %v519, 0.0
        %v521 = vmin.f32 %v510, %v516
        %v522 = vmax.f32 %v509, %v515
        %v523 = vsub.f32 %v521, %v522
        %v524 = vmax.f32 %v523, 0.0
        %v525 = vmul.f32 %v520, %v524
        %v526 = vmul.f32 %v493, %v497
        %v527 = vmul.f32 %v502, %v504
        %v528 = vadd.f32 %v526, %v527
        %v529 = vsub.f32 %v528, %v525
        %v530 = vadd.f32 %v529, 1e-07
        %v531 = vrcp.pop %v530
        %v532 = vmul.f32 %v525, %v531
        %v533 = vmax.f32 %v507, %v513
        %v534 = vmin.f32 %v506, %v512
        %v535 = vsub.f32 %v533, %v534
        %v536 = vmax.f32 %v510, %v516
        %v537 = vmin.f32 %v509, %v515
        %v538 = vsub.f32 %v536, %v537
        %v539 = vmul.f32 %v535, %v535
        %v540 = vmul.f32 %v538, %v538
        %v541 = vadd.f32 %v539, %v540
        %v542 = vadd.f32 %v541, 1e-07
        %v543 = vadd.f32 %v512, %v513
        %v544 = vsub.f32 %v543, %v506
        %v545 = vsub.f32 %v544, %v507
        %v546 = vmul.f32 %v545, %v545
        %v547 = vadd.f32 %v515, %v516
        %v548 = vsub.f32 %v547, %v509
        %v549 = vsub.f32 %v548, %v510
        %v550 = vmul.f32 %v549, %v549
        %v551 = vadd.f32 %v546, %v550
        %v552 = vmul.f32 %v551, 0.25
        %v553 = vadd.f32 %v504, 1e-07
        %v554 = vrcp.pop %v553
        %v555 = vmul.f32 %v502, %v554
        %vm556 = vcmp.lt.f32.partialorder %v555, 0.0
        %v557 = vsel %vm556, -1.0, 1.0
        %v558 = vand.u32 2147483647, %v555
        %vm559 = vcmp.gt.f32.partialorder %v558, 1.0
        %v560 = vmax.f32 %v558, 1e-30
        %v561 = vrcp.pop %v560
        %v562 = vsel %vm559, %v561, %v558
        %v563 = vmul.f32 %v562, %v562
        %v564 = vadd.f32 %v563, 1.0
        %v565 = vrsqrt.pop %v564
        %v566 = vmul.f32 %v564, %v565
        %vm567 = vcmp.eq.f32.partialorder %v564, inf
        %v568 = vsel %vm567, %v564, %v566
        %vm569 = vcmp.eq.f32.partialorder %v564, 0.0
        %v570 = vand.u32 %v564, 2147483648
        %v571 = vsel %vm569, %v570, %v568
        %v572 = vadd.f32 %v571, 1.0
        %v573 = vrcp.pop %v572
        %v574 = vmul.f32 %v562, %v573
        %v575 = vmul.f32 %v574, %v574
        %v576 = vadd.f32 %v575, 1.0
        %v577 = vrsqrt.pop %v576
        %v578 = vmul.f32 %v576, %v577
        %vm579 = vcmp.eq.f32.partialorder %v576, inf
        %v580 = vsel %vm579, %v576, %v578
        %vm581 = vcmp.eq.f32.partialorder %v576, 0.0
        %v582 = vand.u32 %v576, 2147483648
        %v583 = vsel %vm581, %v582, %v580
        %v584 = vadd.f32 %v583, 1.0
        %v585 = vrcp.pop %v584
        %v586 = vmul.f32 %v574, %v585
        %v587 = vmul.f32 %v586, %v586
        %v588 = vmul.f32 %v587, 0.11111111
        %v589 = vadd.f32 %v588, -0.14285715
        %v590 = vmul.f32 %v587, %v589
        %v591 = vadd.f32 %v590, 0.2
        %v592 = vmul.f32 %v587, %v591
        %v593 = vadd.f32 %v592, -0.33333334
        %v594 = vmul.f32 %v587, %v593
        %v595 = vadd.f32 %v594, 1.0
        %v596 = vmul.f32 %v586, %v595
        %v597 = vmul.f32 %v596, 4.0
        %v598 = vsub.f32 1.5707964, %v597
        %v599 = vsel %vm559, %v598, %v597
        %v600 = vmul.f32 %v557, %v599
        %v601 = vadd.f32 %v497, 1e-07
        %v602 = vrcp.pop %v601
        %v603 = vmul.f32 %v493, %v602
        %vm604 = vcmp.lt.f32.partialorder %v603, 0.0
        %v605 = vsel %vm604, -1.0, 1.0
        %v606 = vand.u32 2147483647, %v603
        %vm607 = vcmp.gt.f32.partialorder %v606, 1.0
        %v608 = vmax.f32 %v606, 1e-30
        %v609 = vrcp.pop %v608
        %v610 = vsel %vm607, %v609, %v606
        %v611 = vmul.f32 %v610, %v610
        %v612 = vadd.f32 %v611, 1.0
        %v613 = vrsqrt.pop %v612
        %v614 = vmul.f32 %v612, %v613
        %vm615 = vcmp.eq.f32.partialorder %v612, inf
        %v616 = vsel %vm615, %v612, %v614
        %vm617 = vcmp.eq.f32.partialorder %v612, 0.0
        %v618 = vand.u32 %v612, 2147483648
        %v619 = vsel %vm617, %v618, %v616
        %v620 = vadd.f32 %v619, 1.0
        %v621 = vrcp.pop %v620
        %v622 = vmul.f32 %v610, %v621
        %v623 = vmul.f32 %v622, %v622
        %v624 = vadd.f32 %v623, 1.0
        %v625 = vrsqrt.pop %v624
        %v626 = vmul.f32 %v624, %v625
        %vm627 = vcmp.eq.f32.partialorder %v624, inf
        %v628 = vsel %vm627, %v624, %v626
        %vm629 = vcmp.eq.f32.partialorder %v624, 0.0
        %v630 = vand.u32 %v624, 2147483648
        %v631 = vsel %vm629, %v630, %v628
        %v632 = vadd.f32 %v631, 1.0
        %v633 = vrcp.pop %v632
        %v634 = vmul.f32 %v622, %v633
        %v635 = vmul.f32 %v634, %v634
        %v636 = vmul.f32 %v635, 0.11111111
        %v637 = vadd.f32 %v636, -0.14285715
        %v638 = vmul.f32 %v635, %v637
        %v639 = vadd.f32 %v638, 0.2
        %v640 = vmul.f32 %v635, %v639
        %v641 = vadd.f32 %v640, -0.33333334
        %v642 = vmul.f32 %v635, %v641
        %v643 = vadd.f32 %v642, 1.0
        %v644 = vmul.f32 %v634, %v643
        %v645 = vmul.f32 %v644, 4.0
        %v646 = vsub.f32 1.5707964, %v645
        %v647 = vsel %vm607, %v646, %v645
        %v648 = vmul.f32 %v605, %v647
        %v649 = vsub.f32 %v600, %v648
        %v650 = vmul.f32 %v649, %v649
        %v651 = vmul.f32 %v650, 0.40528473
        %v652 = vsub.f32 %v651, %v532
        %v653 = vadd.f32 %v652, 1.0000001
        %v654 = vrcp.pop %v653
        %v655 = vmul.f32 %v651, %v654
        %v656 = vrcp.pop %v542
        %v657 = vmul.f32 %v552, %v656
        %v658 = vmul.f32 %v651, %v655
        %v659 = vadd.f32 %v657, %v658
        %v660 = vsub.f32 %v532, %v659
        %661 = vst [vmem:[%s445] sm:$0xff] %v660
        %v662 = vsub.f32 1.0, %v660
        %v663 = vmul.f32 %v662, %v460
        %664 = vst [vmem:[%s452] sm:$0xff] %v663
        %v665 = vld [vmem:[%s390] sm:$0xff]
        %s666 = scalar_lea.vmem %s363, 40 [#allocation2]
        %v667 = vld [vmem:[%s666] sm:$0xff]
        %vm668 = vcmp.eq.s32.totalorder %v665, 0
        %v669 = vsel %vm668, 1.0, 0.0
        %v670 = vand.u32 2147483647, %v667
        %v671 = vsub.f32 0.0, %v670
        %v672 = vmul.f32 %v671, 1.442695
        %v673 = vpow.pop %v672
        %v674 = vadd.f32 %v673, 1.0
        %v675 = vlog2.pop %v674
        %v676 = vmul.f32 %v675, 0.6931472
        %v677 = vsub.f32 0.0, %v667
        %v678 = vmax.f32 %v677, 0.0
        %v679 = vadd.f32 %v678, %v676
        %v680 = vmul.f32 %v669, %v679
        %v681 = vsub.f32 1.0, %v669
        %v682 = vmax.f32 %v667, 0.0
        %v683 = vadd.f32 %v682, %v676
        %v684 = vmul.f32 %v681, %v683
        %v685 = vadd.f32 %v680, %v684
        %v686 = vadd.f32 %v685, 0.0
        %s687 = scalar_lea.vmem %s363, 48 [#allocation2]
        %v688 = vld [vmem:[%s687] sm:$0xff]
        %vm689 = vcmp.eq.s32.totalorder %v665, 1
        %v690 = vsel %vm689, 1.0, 0.0
        %v691 = vand.u32 2147483647, %v688
        %v692 = vsub.f32 0.0, %v691
        %v693 = vmul.f32 %v692, 1.442695
        %v694 = vpow.pop %v693
        %v695 = vadd.f32 %v694, 1.0
        %v696 = vlog2.pop %v695
        %v697 = vmul.f32 %v696, 0.6931472
        %v698 = vsub.f32 0.0, %v688
        %v699 = vmax.f32 %v698, 0.0
        %v700 = vadd.f32 %v699, %v697
        %v701 = vmul.f32 %v690, %v700
        %v702 = vsub.f32 1.0, %v690
        %v703 = vmax.f32 %v688, 0.0
        %v704 = vadd.f32 %v703, %v697
        %v705 = vmul.f32 %v702, %v704
        %v706 = vadd.f32 %v701, %v705
        %v707 = vadd.f32 %v686, %v706
        %s708 = scalar_lea.vmem %s363, 56 [#allocation2]
        %v709 = vld [vmem:[%s708] sm:$0xff]
        %vm710 = vcmp.eq.s32.totalorder %v665, 2
        %v711 = vsel %vm710, 1.0, 0.0
        %v712 = vand.u32 2147483647, %v709
        %v713 = vsub.f32 0.0, %v712
        %v714 = vmul.f32 %v713, 1.442695
        %v715 = vpow.pop %v714
        %v716 = vadd.f32 %v715, 1.0
        %v717 = vlog2.pop %v716
        %v718 = vmul.f32 %v717, 0.6931472
        %v719 = vsub.f32 0.0, %v709
        %v720 = vmax.f32 %v719, 0.0
        %v721 = vadd.f32 %v720, %v718
        %v722 = vmul.f32 %v711, %v721
        %v723 = vsub.f32 1.0, %v711
        %v724 = vmax.f32 %v709, 0.0
        %v725 = vadd.f32 %v724, %v718
        %v726 = vmul.f32 %v723, %v725
        %v727 = vadd.f32 %v722, %v726
        %v728 = vadd.f32 %v707, %v727
        %s729 = scalar_lea.vmem %s363, 64 [#allocation2]
        %v730 = vld [vmem:[%s729] sm:$0xff]
        %vm731 = vcmp.eq.s32.totalorder %v665, 3
        %v732 = vsel %vm731, 1.0, 0.0
        %v733 = vand.u32 2147483647, %v730
        %v734 = vsub.f32 0.0, %v733
        %v735 = vmul.f32 %v734, 1.442695
        %v736 = vpow.pop %v735
        %v737 = vadd.f32 %v736, 1.0
        %v738 = vlog2.pop %v737
        %v739 = vmul.f32 %v738, 0.6931472
        %v740 = vsub.f32 0.0, %v730
        %v741 = vmax.f32 %v740, 0.0
        %v742 = vadd.f32 %v741, %v739
        %v743 = vmul.f32 %v732, %v742
        %v744 = vsub.f32 1.0, %v732
        %v745 = vmax.f32 %v730, 0.0
        %v746 = vadd.f32 %v745, %v739
        %v747 = vmul.f32 %v744, %v746
        %v748 = vadd.f32 %v743, %v747
        %v749 = vadd.f32 %v728, %v748
        %v750 = vmul.f32 %v749, %v460
        %751 = vst [vmem:[%s459] sm:$0xff] %v750
        %s752 = sand.u32 %s172, 1
        %s753 = scalar_lea.sflag [#allocation4], %s752
        %s754 = sand.u32 %s172, 1
        %s755 = smul.addr %s754, 8
        %s756 = scalar_lea.vmem [#allocation11], %s755
        %s757 = sand.u32 %s34, 1
        %s758 = scalar_lea.sflag [#allocation13], %s757
        %s759 = sand.u32 %s198, 1
        %s760 = smul.addr %s759, 8
        %s761 = scalar_lea.vmem [#allocation12], %s760
        %s762 = sand.u32 %s34, 1
        %s763 = scalar_lea.sflag [#allocation13], %s762
        %s764 = sand.u32 %s224, 1
        %s765 = smul.addr %s764, 8
        %s766 = scalar_lea.vmem [#allocation14], %s765
        // Predicated region
        $region61: #{tpu_custom_call.1} parent=39 // pred_check
          %p767 = pneg %p182
        $region62: #{tpu_custom_call.1} parent=39 // pred_check_branch
          %769 = sbr.rel (%p767) target = $region64
        $region63: #{tpu_custom_call.1} parent=39 // pred_region
          %s771 = ssub.s32 128, 128
          %772 = vsyncadd %s753, %s771
          %s773 = smul.addr %s34, 128
          %s774 = scalar_lea.hbm %s5, %s773
          %s776 = sshll.u32 %s756, 4
          %s777 = int_to_ptr.vmem [resolvable:$true] %s776
          %779 = dma.vmem_to_hbm [thread:$0]  %s777, 128, %s774, %s753
        $region64: #{tpu_custom_call.1} parent=39 // pred_fallthru
          _
        // Predicated region
        $region65: #{tpu_custom_call.1} parent=39 // pred_check
          %p780 = pneg %p208
        $region66: #{tpu_custom_call.1} parent=39 // pred_check_branch
          %782 = sbr.rel (%p780) target = $region68
        $region67: #{tpu_custom_call.1} parent=39 // pred_region
          %s784 = ssub.s32 128, 128
          %785 = vsyncadd %s758, %s784
          %s786 = smul.addr %s34, 128
          %s787 = scalar_lea.hbm %s6, %s786
          %s789 = sshll.u32 %s761, 4
          %s790 = int_to_ptr.vmem [resolvable:$true] %s789
          %792 = dma.vmem_to_hbm [thread:$0]  %s790, 128, %s787, %s758
        $region68: #{tpu_custom_call.1} parent=39 // pred_fallthru
          _
        // Predicated region
        $region69: #{tpu_custom_call.1} parent=39 // pred_check
          %p793 = pneg %p234
        $region70: #{tpu_custom_call.1} parent=39 // pred_check_branch
          %795 = sbr.rel (%p793) target = $region72
        $region71: #{tpu_custom_call.1} parent=39 // pred_region
          %s797 = ssub.s32 128, 128
          %798 = vsyncadd %s763, %s797
          %s799 = smul.addr %s34, 128
          %s800 = scalar_lea.hbm %s7, %s799
          %s802 = sshll.u32 %s766, 4
          %s803 = int_to_ptr.vmem [resolvable:$true] %s802
          %805 = dma.vmem_to_hbm [thread:$0]  %s803, 128, %s800, %s763
        $region72: #{tpu_custom_call.1} parent=39 // pred_fallthru
          _
      $region40: #{tpu_custom_call.1} parent=5 // pred_fallthru
        _
      %p806 = scmp.le.s32.totalorder 2, %s29
      // Predicated region
      $region73: #{tpu_custom_call.1} parent=5 // pred_check
        %p807 = pneg %p806
      $region74: #{tpu_custom_call.1} parent=5 // pred_check_branch
        %809 = sbr.rel (%p807) target = $region76
      $region75: #{tpu_custom_call.1} parent=5 // pred_region
        %s810 = ssub.s32 %s29, 2
        // Predicated region
        $region77: #{tpu_custom_call.1} parent=75 // pred_check
          %p811 = pneg %p188
        $region78: #{tpu_custom_call.1} parent=75 // pred_check_branch
          %813 = sbr.rel (%p811) target = $region80
        $region79: #{tpu_custom_call.1} parent=75 // pred_region
          %s814 = sand.u32 %s173, 1
          %s815 = scalar_lea.sflag [#allocation4], %s814
          %s816 = sand.u32 %s173, 1
          %s817 = smul.addr %s816, 8
          %s818 = scalar_lea.vmem [#allocation11], %s817
          %819 = dma.done %s815, 128
        $region80: #{tpu_custom_call.1} parent=75 // pred_fallthru
          _
        // Predicated region
        $region81: #{tpu_custom_call.1} parent=75 // pred_check
          %p820 = pneg %p214
        $region82: #{tpu_custom_call.1} parent=75 // pred_check_branch
          %822 = sbr.rel (%p820) target = $region84
        $region83: #{tpu_custom_call.1} parent=75 // pred_region
          %s823 = sand.u32 %s35, 1
          %s824 = scalar_lea.sflag [#allocation13], %s823
          %s825 = sand.u32 %s199, 1
          %s826 = smul.addr %s825, 8
          %s827 = scalar_lea.vmem [#allocation12], %s826
          %828 = dma.done %s824, 128
        $region84: #{tpu_custom_call.1} parent=75 // pred_fallthru
          _
        // Predicated region
        $region85: #{tpu_custom_call.1} parent=75 // pred_check
          %p829 = pneg %p240
        $region86: #{tpu_custom_call.1} parent=75 // pred_check_branch
          %831 = sbr.rel (%p829) target = $region88
        $region87: #{tpu_custom_call.1} parent=75 // pred_region
          %s832 = sand.u32 %s35, 1
          %s833 = scalar_lea.sflag [#allocation13], %s832
          %s834 = sand.u32 %s225, 1
          %s835 = smul.addr %s834, 8
          %s836 = scalar_lea.vmem [#allocation14], %s835
          %837 = dma.done %s833, 128
        $region88: #{tpu_custom_call.1} parent=75 // pred_fallthru
          _
      $region76: #{tpu_custom_call.1} parent=5 // pred_fallthru
        _
    $region6: #{tpu_custom_call.1} parent=1 // loop_footer
      %s33 = sadd.s32 1, %s29
    $region7: #{tpu_custom_call.1} parent=1 // loop_footer_branch
      %28 = sbr.rel target = $region3
    $region8: #{tpu_custom_call.1} parent=1 // loop_exit
      _
    %838 = vsyncpa [#allocation3], 1
    %s839 = scalar_lea.sflag [#allocation3], 1
    %840 = vsyncpa %s839, 1
    %841 = vsyncpa [#allocation6], 1
    %s842 = scalar_lea.sflag [#allocation6], 1
    %843 = vsyncpa %s842, 1
    %844 = vsyncpa [#allocation9], 1
    %s845 = scalar_lea.sflag [#allocation9], 1
    %846 = vsyncpa %s845, 1
    %847 = vsyncpa [#allocation4], 1
    %s848 = scalar_lea.sflag [#allocation4], 1
    %849 = vsyncpa %s848, 1
    %850 = vsyncpa [#allocation13], 1
    %s851 = scalar_lea.sflag [#allocation13], 1
    %852 = vsyncpa %s851, 1

</llo_original>
